<compile_context>
chip_gen: v7x
topology: tpu7x:2x2x1
jax: 0.10.0
libtpu: 0.0.40
codegen_flags: <defaults>
</compile_context>

<pallas_src>
import jax
import jax.numpy as jnp
from jax.experimental import pallas as pl
from jax.experimental.pallas import tpu as pltpu


# --------------------------------------------------------------------------
# Kernel 1: encode + generate.  grid = (n_batch_tiles, n_vocab_tiles)
# --------------------------------------------------------------------------
def _encode_generate_kernel(x_ref, w1s_ref, b11_ref, w12_ref, b12_ref,
                            w2122_ref, b2122_ref,
                            wg1_ref, bg1_ref, wg2_ref, bg2_ref,
                            wg3_ref, bg3_ref, wg4_ref, bg4_ref,
                            packed_ref, acc_ref):
    v = pl.program_id(1)
    bf16 = jnp.bfloat16

    @pl.when(v == 0)
    def _():
        acc_ref[...] = jnp.zeros_like(acc_ref)

    # x streamed as f32 (no separate wrapper-side cast pass over HBM); cast
    # to bf16 in VMEM right before the MXU op.  Fused x @ [W11 | Ws]
    # accumulation over vocab tiles, f32 accumulator in VMEM scratch.
    acc_ref[...] += jnp.dot(x_ref[...].astype(bf16), w1s_ref[...],
                            preferred_element_type=jnp.float32)

    @pl.when(v == pl.num_programs(1) - 1)
    def _():
        H = b11_ref.shape[1]
        K = bg1_ref.shape[1]

        def mm(a, w_ref):
            return jnp.dot(a.astype(bf16), w_ref[...],
                           preferred_element_type=jnp.float32)

        acc = acc_ref[...]                       # (Bt, 2H): [x@W11 | x@Ws]
        e1 = jnp.maximum(acc[:, :H] + b11_ref[...], 0.0)
        e1 = jnp.maximum(mm(e1, w12_ref) + b12_ref[...], 0.0)
        e1 = e1 + acc[:, H:]

        muvl = mm(e1, w2122_ref) + b2122_ref[...]   # fused [mu | logvar]
        mu = muvl[:, :K]
        lv = muvl[:, K:]

        z = mu                                      # eval-mode reparameterize
        g = jnp.tanh(mm(z, wg1_ref) + bg1_ref[...])
        g = jnp.tanh(mm(g, wg2_ref) + bg2_ref[...])
        g = jnp.tanh(mm(g, wg3_ref) + bg3_ref[...])
        g = jnp.tanh(mm(g, wg4_ref) + bg4_ref[...])
        g = g + z

        # Lane-dense packed output slab: z || g || mu || logvar  (Bt, 4K).
        packed_ref[...] = jnp.concatenate([z, g, mu, lv], axis=1)


# --------------------------------------------------------------------------
# Kernel 2: decode + softmax.  grid = (n_batch_tiles, 2 passes, n_vocab_tiles)
#   pass s=0: stream Wd1 tile, compute logits once, cache exp(logits - tmax)
#             and tmax in VMEM, keep running row-max / sum-of-exp
#   pass s=1: rescale the cached tile by exp(tmax - m_final)/l_final and store
#             the lane-dense output tile (no matmul, no exp, no Wd1 stream)
# --------------------------------------------------------------------------
def _decode_softmax_kernel(g_ref, wd1_ref, bd1_ref, d_ref,
                           ecache_ref, mcache_ref, m_ref, l_ref):
    s = pl.program_id(1)
    v = pl.program_id(2)
    bf16 = jnp.bfloat16

    @pl.when(jnp.logical_and(s == 0, v == 0))
    def _():
        m_ref[...] = jnp.full_like(m_ref, -jnp.inf)
        l_ref[...] = jnp.zeros_like(l_ref)

    @pl.when(s == 0)
    def _():
        logits = jnp.dot(g_ref[...].astype(bf16), wd1_ref[...],
                         preferred_element_type=jnp.float32) + bd1_ref[...]
        m_tile = jnp.max(logits, axis=-1, keepdims=True)      # (Bt, 1)
        e_tile = jnp.exp(logits - m_tile)                      # (Bt, Vt)
        ecache_ref[v] = e_tile                                 # first-axis dyn idx
        mcache_ref[v] = m_tile

        m_old = m_ref[...]
        m_new = jnp.maximum(m_old, m_tile)
        l_ref[...] = (l_ref[...] * jnp.exp(m_old - m_new)
                      + jnp.sum(e_tile, axis=-1, keepdims=True)
                        * jnp.exp(m_tile - m_new))
        m_ref[...] = m_new

    @pl.when(s == 1)
    def _():
        scale = jnp.exp(mcache_ref[v] - m_ref[...]) / l_ref[...]
        d_ref[...] = ecache_ref[v] * scale


# --------------------------------------------------------------------------
# One-time parameter packing (hoisted out of the forward pass)
# --------------------------------------------------------------------------
def pack_ntm_params(params):
    """Fuse / cast weights once; call outside the per-step forward."""
    f32, bf16 = jnp.float32, jnp.bfloat16
    p = {}
    p["w1s"] = jnp.concatenate([params["w11"], params["ws"]], axis=1).astype(bf16)   # (V, 2H)
    p["b11"] = params["b11"].astype(f32)
    p["w12"] = params["w12"].astype(bf16)
    p["b12"] = params["b12"].astype(f32)
    p["w2122"] = jnp.concatenate([params["w21"], params["w22"]], axis=1).astype(bf16)  # (H, 2K)
    p["b2122"] = jnp.concatenate([params["b21"], params["b22"]], axis=1).astype(f32)   # (1, 2K)
    for i in (1, 2, 3, 4):
        p[f"wg{i}"] = params[f"wg{i}"].astype(bf16)
        p[f"bg{i}"] = params[f"bg{i}"].astype(f32)
    p["wd1"] = params["wd1"].astype(bf16)
    p["bd1"] = params["bd1"].astype(f32)
    return p


def _pick_tile(dim, cap):
    """Largest 128-multiple divisor of `dim` that is <= cap, else full dim."""
    best = None
    t = 128
    while t <= min(dim, cap):
        if dim % t == 0:
            best = t
        t += 128
    return best if best is not None else dim


# --------------------------------------------------------------------------
# Wrapper
# --------------------------------------------------------------------------
def ntm_forward(x, pp, *, batch_tile=256, enc_vocab_tile=None,
                dec_vocab_tile=None):
    """x: (B, V) f32.  pp: output of pack_ntm_params."""
    B, V = x.shape
    H = pp["b11"].shape[1]
    K = pp["bg1"].shape[1]
    f32 = jnp.float32

    # On v7x prefer batch_tile giving n_b >= 2 so both TensorCores are used;
    # tiles below are sized well under 32 MiB scoped VMEM for realistic shapes.
    Bt = min(B, batch_tile)
    assert B % Bt == 0, "batch must be divisible by the batch tile"
    Vt1 = enc_vocab_tile if enc_vocab_tile is not None else _pick_tile(V, 2048)
    Vt2 = dec_vocab_tile if dec_vocab_tile is not None else _pick_tile(V, 4096)
    assert V % Vt1 == 0, "encoder vocab tile must divide V"
    assert V % Vt2 == 0, "decoder vocab tile must divide V"
    n_b, n_v1, n_v2 = B // Bt, V // Vt1, V // Vt2

    def const_spec(shape):
        return pl.BlockSpec(shape, lambda b, v: (0, 0))

    # ---------------- kernel 1: encode + generate ----------------
    flops1 = 2 * B * (V * 2 * H + H * H + H * 2 * K + 4 * K * K)
    bytes1 = (n_b * 2 * V * 2 * H                                # bf16 [W11|Ws] per batch tile
              + 2 * (H * H + H * 2 * K + 4 * K * K)              # small bf16 weights
              + 4 * (2 * H + 2 * K + 4 * K)                      # f32 biases
              + 4 * B * V + 4 * B * 4 * K)                       # f32 x in, slab out
    packed = pl.pallas_call(
        _encode_generate_kernel,
        out_shape=jax.ShapeDtypeStruct((B, 4 * K), f32),
        grid=(n_b, n_v1),
        in_specs=[
            pl.BlockSpec((Bt, Vt1), lambda b, v: (b, v)),        # x tile (f32)
            pl.BlockSpec((Vt1, 2 * H), lambda b, v: (v, 0)),     # [W11 | Ws] tile
            const_spec((1, H)),                                   # b11
            const_spec((H, H)),                                   # W12
            const_spec((1, H)),                                   # b12
            const_spec((H, 2 * K)),                               # [W21 | W22]
            const_spec((1, 2 * K)),                               # [b21 | b22]
            const_spec((K, K)), const_spec((1, K)),               # Wg1, bg1
            const_spec((K, K)), const_spec((1, K)),               # Wg2, bg2
            const_spec((K, K)), const_spec((1, K)),               # Wg3, bg3
            const_spec((K, K)), const_spec((1, K)),               # Wg4, bg4
        ],
        out_specs=pl.BlockSpec((Bt, 4 * K), lambda b, v: (b, 0)),
        scratch_shapes=[pltpu.VMEM((Bt, 2 * H), f32)],
        compiler_params=pltpu.CompilerParams(
            dimension_semantics=("parallel", "arbitrary")),
        cost_estimate=pl.CostEstimate(flops=flops1,
                                      transcendentals=B * 4 * K,
                                      bytes_accessed=bytes1),
    )(x, pp["w1s"], pp["b11"], pp["w12"], pp["b12"], pp["w2122"], pp["b2122"],
      pp["wg1"], pp["bg1"], pp["wg2"], pp["bg2"],
      pp["wg3"], pp["bg3"], pp["wg4"], pp["bg4"])

    z = packed[:, 0 * K:1 * K]
    g = packed[:, 1 * K:2 * K]
    mu = packed[:, 2 * K:3 * K]
    lv = packed[:, 3 * K:4 * K]

    # ---------------- kernel 2: decode + softmax ----------------
    # g is passed as f32 (cast to bf16 inside the kernel).
    flops2 = 2 * B * K * V
    bytes2 = n_b * 2 * K * V + 4 * V + 4 * B * K + 4 * B * V
    d = pl.pallas_call(
        _decode_softmax_kernel,
        out_shape=jax.ShapeDtypeStruct((B, V), f32),
        grid=(n_b, 2, n_v2),
        in_specs=[
            pl.BlockSpec((Bt, K), lambda b, s, v: (b, 0)),       # g (resident per b)
            # Stream Wd1/bd1 tiles only during pass 0; park on tile 0 in pass 1.
            pl.BlockSpec((K, Vt2), lambda b, s, v: (0, v * (1 - s))),
            pl.BlockSpec((1, Vt2), lambda b, s, v: (0, v * (1 - s))),
        ],
        # pass 0: stay on block (b, 0) (never written); pass 1: write tile v.
        out_specs=pl.BlockSpec((Bt, Vt2), lambda b, s, v: (b, v * s)),
        scratch_shapes=[
            pltpu.VMEM((n_v2, Bt, Vt2), f32),   # exp(logits - tile_max) cache
            pltpu.VMEM((n_v2, Bt, 1), f32),     # per-tile maxes
            pltpu.VMEM((Bt, 1), f32),           # running row max
            pltpu.VMEM((Bt, 1), f32),           # running sum of exp
        ],
        compiler_params=pltpu.CompilerParams(
            dimension_semantics=("parallel", "arbitrary", "arbitrary")),
        cost_estimate=pl.CostEstimate(flops=flops2,
                                      transcendentals=B * V,
                                      bytes_accessed=bytes2),
    )(g, pp["wd1"], pp["bd1"])

    return z, g, d, mu, lv


# --------------------------------------------------------------------------
# Params / reference
# --------------------------------------------------------------------------
def init_params(key, input_dim, hidden_dim, topic_num):
    """Deterministic param init. Weights stored (in, out), biases (1, out)."""
    ks = jax.random.split(key, 10)

    def lin(k, din, dout, bias=True):
        kw, kb = jax.random.split(k)
        scale = 1.0 / jnp.sqrt(din)
        w = jax.random.uniform(kw, (din, dout), jnp.float32, -scale, scale)
        if not bias:
            return w, None
        b = jax.random.uniform(kb, (1, dout), jnp.float32, -scale, scale)
        return w, b

    p = {}
    p["w11"], p["b11"] = lin(ks[0], input_dim, hidden_dim)
    p["w12"], p["b12"] = lin(ks[1], hidden_dim, hidden_dim)
    p["w21"], p["b21"] = lin(ks[2], hidden_dim, topic_num)
    p["w22"], p["b22"] = lin(ks[3], hidden_dim, topic_num)
    p["ws"], _         = lin(ks[4], input_dim, hidden_dim, bias=False)
    p["wg1"], p["bg1"] = lin(ks[5], topic_num, topic_num)
    p["wg2"], p["bg2"] = lin(ks[6], topic_num, topic_num)
    p["wg3"], p["bg3"] = lin(ks[7], topic_num, topic_num)
    p["wg4"], p["bg4"] = lin(ks[8], topic_num, topic_num)
    p["wd1"], p["bd1"] = lin(ks[9], topic_num, input_dim)
    return p


def ntm_reference(x, p):
    """Plain-JAX reference mirroring the kernel's bf16-in / f32-accumulate matmuls."""
    bf16 = jnp.bfloat16

    def mm(a, w):
        return jnp.dot(a.astype(bf16), w.astype(bf16),
                       preferred_element_type=jnp.float32)

    e1 = jnp.maximum(mm(x, p["w11"]) + p["b11"], 0.0)
    e1 = jnp.maximum(mm(e1, p["w12"]) + p["b12"], 0.0)
    e1 = e1 + mm(x, p["ws"])
    mu = mm(e1, p["w21"]) + p["b21"]
    lv = mm(e1, p["w22"]) + p["b22"]
    z = mu
    g = jnp.tanh(mm(z, p["wg1"]) + p["bg1"])
    g = jnp.tanh(mm(g, p["wg2"]) + p["bg2"])
    g = jnp.tanh(mm(g, p["wg3"]) + p["bg3"])
    g = jnp.tanh(mm(g, p["wg4"]) + p["bg4"])
    g = g + z
    d = jax.nn.softmax(mm(g, p["wd1"]) + p["bd1"], axis=1)
    return z, g, d, mu, lv


if __name__ == "__main__":
    # Small, module-consistent shapes: bow_vocab_size=256, hidden=128, topics=32.
    # Explicit 128-wide vocab tiles -> two vocab tiles per kernel, exercising
    # the tiled reduction in kernel 1 and the cached 2-pass softmax in kernel 2.
    B, V, H, K = 8, 256, 128, 32

    key = jax.random.PRNGKey(0)
    kx, kp = jax.random.split(key)
    x = jax.random.uniform(kx, (B, V), jnp.float32, 0.0, 3.0)  # bow-style counts
    params = init_params(kp, V, H, K)
    packed_params = pack_ntm_params(params)   # one-time weight packing

    fwd = jax.jit(lambda xx: ntm_forward(xx, packed_params, batch_tile=8,
                                         enc_vocab_tile=128, dec_vocab_tile=128))
    outs = jax.block_until_ready(fwd(x))
    refs = ntm_reference(x, params)

    names = ("z", "g", "d", "mu", "logvar")
    for name, o, r in zip(names, outs, refs):
        assert o.shape == r.shape and o.dtype == r.dtype, f"{name} shape/dtype"
        err = float(jnp.max(jnp.abs(o - r)))
        assert err < 1e-2, f"{name} mismatch vs reference: {err}"
    # softmax rows must sum to ~1 (exact division in the epilogue)
    assert float(jnp.max(jnp.abs(jnp.sum(outs[2], axis=1) - 1.0))) < 1e-3

    print("KERNEL_OK")
</pallas_src>

<mosaic_0001>
module attributes {stable_mosaic.version = 11 : i64} {
  func.func @_encode_generate_kernel(%arg0: i32, %arg1: i32, %arg2: memref<8x128xf32, #tpu.memory_space<vmem>>, %arg3: memref<128x256xbf16, #tpu.memory_space<vmem>>, %arg4: memref<1x128xf32, #tpu.memory_space<vmem>>, %arg5: memref<128x128xbf16, #tpu.memory_space<vmem>>, %arg6: memref<1x128xf32, #tpu.memory_space<vmem>>, %arg7: memref<128x64xbf16, #tpu.memory_space<vmem>>, %arg8: memref<1x64xf32, #tpu.memory_space<vmem>>, %arg9: memref<32x32xbf16, #tpu.memory_space<vmem>>, %arg10: memref<1x32xf32, #tpu.memory_space<vmem>>, %arg11: memref<32x32xbf16, #tpu.memory_space<vmem>>, %arg12: memref<1x32xf32, #tpu.memory_space<vmem>>, %arg13: memref<32x32xbf16, #tpu.memory_space<vmem>>, %arg14: memref<1x32xf32, #tpu.memory_space<vmem>>, %arg15: memref<32x32xbf16, #tpu.memory_space<vmem>>, %arg16: memref<1x32xf32, #tpu.memory_space<vmem>>, %arg17: memref<8x128xf32, #tpu.memory_space<vmem>>, %arg18: memref<8x256xf32, #tpu.memory_space<vmem>>) attributes {dimension_semantics = [#tpu.dimension_semantics<parallel>, #tpu.dimension_semantics<arbitrary>], iteration_bounds = array<i64: 1, 2>, scalar_prefetch = 0 : i64, scratch_operands = 1 : i64, tpu.core_type = #tpu.core_type<tc>, window_params = [{transform_indices = @transform_0, window_bounds = array<i64: 8, 128>}, {transform_indices = @transform_1, window_bounds = array<i64: 128, 256>}, {pipeline_mode = #tpu.pipeline_mode<synchronous>, transform_indices = @transform_2, window_bounds = array<i64: 1, 128>}, {pipeline_mode = #tpu.pipeline_mode<synchronous>, transform_indices = @transform_3, window_bounds = array<i64: 128, 128>}, {pipeline_mode = #tpu.pipeline_mode<synchronous>, transform_indices = @transform_4, window_bounds = array<i64: 1, 128>}, {pipeline_mode = #tpu.pipeline_mode<synchronous>, transform_indices = @transform_5, window_bounds = array<i64: 128, 64>}, {pipeline_mode = #tpu.pipeline_mode<synchronous>, transform_indices = @transform_6, window_bounds = array<i64: 1, 64>}, {pipeline_mode = #tpu.pipeline_mode<synchronous>, transform_indices = @transform_7, window_bounds = array<i64: 32, 32>}, {pipeline_mode = #tpu.pipeline_mode<synchronous>, transform_indices = @transform_8, window_bounds = array<i64: 1, 32>}, {pipeline_mode = #tpu.pipeline_mode<synchronous>, transform_indices = @transform_9, window_bounds = array<i64: 32, 32>}, {pipeline_mode = #tpu.pipeline_mode<synchronous>, transform_indices = @transform_10, window_bounds = array<i64: 1, 32>}, {pipeline_mode = #tpu.pipeline_mode<synchronous>, transform_indices = @transform_11, window_bounds = array<i64: 32, 32>}, {pipeline_mode = #tpu.pipeline_mode<synchronous>, transform_indices = @transform_12, window_bounds = array<i64: 1, 32>}, {pipeline_mode = #tpu.pipeline_mode<synchronous>, transform_indices = @transform_13, window_bounds = array<i64: 32, 32>}, {pipeline_mode = #tpu.pipeline_mode<synchronous>, transform_indices = @transform_14, window_bounds = array<i64: 1, 32>}, {transform_indices = @transform_15, window_bounds = array<i64: 8, 128>}]} {
    %c0_i32 = arith.constant 0 : i32
    %0 = arith.cmpi eq, %arg1, %c0_i32 : i32
    %1 = arith.extui %0 : i1 to i32
    %c0_i32_0 = arith.constant 0 : i32
    %2 = arith.cmpi ne, %1, %c0_i32_0 : i32
    scf.if %2 {
      %cst_9 = arith.constant 0.000000e+00 : f32
      %13 = vector.broadcast %cst_9 : f32 to vector<8x256xf32>
      %c0_10 = arith.constant 0 : index
      %c0_11 = arith.constant 0 : index
      %14 = vector.load %arg18[%c0_10, %c0_11] : memref<8x256xf32, #tpu.memory_space<vmem>>, vector<8x256xf32>
      tpu.vector_store %arg18[%c0_10, %c0_11], %13 {strides = array<i32>} : memref<8x256xf32, #tpu.memory_space<vmem>>, vector<8x256xf32>,
    } else {
    }
    %c0 = arith.constant 0 : index
    %c0_1 = arith.constant 0 : index
    %3 = vector.load %arg18[%c0, %c0_1] : memref<8x256xf32, #tpu.memory_space<vmem>>, vector<8x256xf32>
    %c0_2 = arith.constant 0 : index
    %c0_3 = arith.constant 0 : index
    %4 = vector.load %arg2[%c0_2, %c0_3] : memref<8x128xf32, #tpu.memory_space<vmem>>, vector<8x128xf32>
    %5 = arith.truncf %4 : vector<8x128xf32> to vector<8x128xbf16>
    %c0_4 = arith.constant 0 : index
    %c0_5 = arith.constant 0 : index
    %6 = vector.load %arg3[%c0_4, %c0_5] : memref<128x256xbf16, #tpu.memory_space<vmem>>, vector<128x256xbf16>
    %cst = arith.constant dense<0.000000e+00> : vector<8x256xf32>
    %7 = tpu.matmul %5, %6, %cst {dimension_numbers = #tpu.dot_dimension_numbers<[1], [0], [0], [1], [0, 0, 1, 1], [], []>} : vector<8x128xbf16>, vector<128x256xbf16>, vector<8x256xf32> -> vector<8x256xf32>
    %8 = arith.addf %3, %7 : vector<8x256xf32>
    %c0_6 = arith.constant 0 : index
    %c0_7 = arith.constant 0 : index
    %9 = vector.load %arg18[%c0_6, %c0_7] : memref<8x256xf32, #tpu.memory_space<vmem>>, vector<8x256xf32>
    tpu.vector_store %arg18[%c0_6, %c0_7], %8 {strides = array<i32>} : memref<8x256xf32, #tpu.memory_space<vmem>>, vector<8x256xf32>,
    %c1_i32 = arith.constant 1 : i32
    %10 = arith.cmpi eq, %arg1, %c1_i32 : i32
    %11 = arith.extui %10 : i1 to i32
    %c0_i32_8 = arith.constant 0 : i32
    %12 = arith.cmpi ne, %11, %c0_i32_8 : i32
    scf.if %12 {
      %c0_9 = arith.constant 0 : index
      %c0_10 = arith.constant 0 : index
      %13 = vector.load %arg18[%c0_9, %c0_10] : memref<8x256xf32, #tpu.memory_space<vmem>>, vector<8x256xf32>
      %14 = vector.extract_strided_slice %13 {offsets = [0, 0], sizes = [8, 128], strides = [1, 1]} : vector<8x256xf32> to vector<8x128xf32>
      %c0_11 = arith.constant 0 : index
      %c0_12 = arith.constant 0 : index
      %15 = vector.load %arg4[%c0_11, %c0_12] : memref<1x128xf32, #tpu.memory_space<vmem>>, vector<1x128xf32>
      %16 = vector.broadcast %15 : vector<1x128xf32> to vector<8x128xf32>
      %17 = arith.addf %14, %16 : vector<8x128xf32>
      %cst_13 = arith.constant 0.000000e+00 : f32
      %18 = vector.broadcast %cst_13 : f32 to vector<8x128xf32>
      %19 = arith.maximumf %17, %18 : vector<8x128xf32>
      %20 = arith.truncf %19 : vector<8x128xf32> to vector<8x128xbf16>
      %c0_14 = arith.constant 0 : index
      %c0_15 = arith.constant 0 : index
      %21 = vector.load %arg5[%c0_14, %c0_15] : memref<128x128xbf16, #tpu.memory_space<vmem>>, vector<128x128xbf16>
      %cst_16 = arith.constant dense<0.000000e+00> : vector<8x128xf32>
      %22 = tpu.matmul %20, %21, %cst_16 {dimension_numbers = #tpu.dot_dimension_numbers<[1], [0], [0], [1], [0, 0, 1, 1], [], []>} : vector<8x128xbf16>, vector<128x128xbf16>, vector<8x128xf32> -> vector<8x128xf32>
      %c0_17 = arith.constant 0 : index
      %c0_18 = arith.constant 0 : index
      %23 = vector.load %arg6[%c0_17, %c0_18] : memref<1x128xf32, #tpu.memory_space<vmem>>, vector<1x128xf32>
      %24 = vector.broadcast %23 : vector<1x128xf32> to vector<8x128xf32>
      %25 = arith.addf %22, %24 : vector<8x128xf32>
      %cst_19 = arith.constant 0.000000e+00 : f32
      %26 = vector.broadcast %cst_19 : f32 to vector<8x128xf32>
      %27 = arith.maximumf %25, %26 : vector<8x128xf32>
      %28 = vector.extract_strided_slice %13 {offsets = [0, 128], sizes = [8, 128], strides = [1, 1]} : vector<8x256xf32> to vector<8x128xf32>
      %29 = arith.addf %27, %28 : vector<8x128xf32>
      %30 = arith.truncf %29 : vector<8x128xf32> to vector<8x128xbf16>
      %c0_20 = arith.constant 0 : index
      %c0_21 = arith.constant 0 : index
      %31 = vector.load %arg7[%c0_20, %c0_21] : memref<128x64xbf16, #tpu.memory_space<vmem>>, vector<128x64xbf16>
      %cst_22 = arith.constant dense<0.000000e+00> : vector<8x64xf32>
      %32 = tpu.matmul %30, %31, %cst_22 {dimension_numbers = #tpu.dot_dimension_numbers<[1], [0], [0], [1], [0, 0, 1, 1], [], []>} : vector<8x128xbf16>, vector<128x64xbf16>, vector<8x64xf32> -> vector<8x64xf32>
      %c0_23 = arith.constant 0 : index
      %c0_24 = arith.constant 0 : index
      %33 = vector.load %arg8[%c0_23, %c0_24] : memref<1x64xf32, #tpu.memory_space<vmem>>, vector<1x64xf32>
      %34 = vector.broadcast %33 : vector<1x64xf32> to vector<8x64xf32>
      %35 = arith.addf %32, %34 : vector<8x64xf32>
      %36 = vector.extract_strided_slice %35 {offsets = [0, 0], sizes = [8, 32], strides = [1, 1]} : vector<8x64xf32> to vector<8x32xf32>
      %37 = vector.extract_strided_slice %35 {offsets = [0, 32], sizes = [8, 32], strides = [1, 1]} : vector<8x64xf32> to vector<8x32xf32>
      %38 = arith.truncf %36 : vector<8x32xf32> to vector<8x32xbf16>
      %c0_25 = arith.constant 0 : index
      %c0_26 = arith.constant 0 : index
      %39 = vector.load %arg9[%c0_25, %c0_26] : memref<32x32xbf16, #tpu.memory_space<vmem>>, vector<32x32xbf16>
      %cst_27 = arith.constant dense<0.000000e+00> : vector<8x32xf32>
      %40 = tpu.matmul %38, %39, %cst_27 {dimension_numbers = #tpu.dot_dimension_numbers<[1], [0], [0], [1], [0, 0, 1, 1], [], []>} : vector<8x32xbf16>, vector<32x32xbf16>, vector<8x32xf32> -> vector<8x32xf32>
      %c0_28 = arith.constant 0 : index
      %c0_29 = arith.constant 0 : index
      %41 = vector.load %arg10[%c0_28, %c0_29] : memref<1x32xf32, #tpu.memory_space<vmem>>, vector<1x32xf32>
      %42 = vector.broadcast %41 : vector<1x32xf32> to vector<8x32xf32>
      %43 = arith.addf %40, %42 : vector<8x32xf32>
      %44 = math.tanh %43 : vector<8x32xf32>
      %45 = arith.truncf %44 : vector<8x32xf32> to vector<8x32xbf16>
      %c0_30 = arith.constant 0 : index
      %c0_31 = arith.constant 0 : index
      %46 = vector.load %arg11[%c0_30, %c0_31] : memref<32x32xbf16, #tpu.memory_space<vmem>>, vector<32x32xbf16>
      %cst_32 = arith.constant dense<0.000000e+00> : vector<8x32xf32>
      %47 = tpu.matmul %45, %46, %cst_32 {dimension_numbers = #tpu.dot_dimension_numbers<[1], [0], [0], [1], [0, 0, 1, 1], [], []>} : vector<8x32xbf16>, vector<32x32xbf16>, vector<8x32xf32> -> vector<8x32xf32>
      %c0_33 = arith.constant 0 : index
      %c0_34 = arith.constant 0 : index
      %48 = vector.load %arg12[%c0_33, %c0_34] : memref<1x32xf32, #tpu.memory_space<vmem>>, vector<1x32xf32>
      %49 = vector.broadcast %48 : vector<1x32xf32> to vector<8x32xf32>
      %50 = arith.addf %47, %49 : vector<8x32xf32>
      %51 = math.tanh %50 : vector<8x32xf32>
      %52 = arith.truncf %51 : vector<8x32xf32> to vector<8x32xbf16>
      %c0_35 = arith.constant 0 : index
      %c0_36 = arith.constant 0 : index
      %53 = vector.load %arg13[%c0_35, %c0_36] : memref<32x32xbf16, #tpu.memory_space<vmem>>, vector<32x32xbf16>
      %cst_37 = arith.constant dense<0.000000e+00> : vector<8x32xf32>
      %54 = tpu.matmul %52, %53, %cst_37 {dimension_numbers = #tpu.dot_dimension_numbers<[1], [0], [0], [1], [0, 0, 1, 1], [], []>} : vector<8x32xbf16>, vector<32x32xbf16>, vector<8x32xf32> -> vector<8x32xf32>
      %c0_38 = arith.constant 0 : index
      %c0_39 = arith.constant 0 : index
      %55 = vector.load %arg14[%c0_38, %c0_39] : memref<1x32xf32, #tpu.memory_space<vmem>>, vector<1x32xf32>
      %56 = vector.broadcast %55 : vector<1x32xf32> to vector<8x32xf32>
      %57 = arith.addf %54, %56 : vector<8x32xf32>
      %58 = math.tanh %57 : vector<8x32xf32>
      %59 = arith.truncf %58 : vector<8x32xf32> to vector<8x32xbf16>
      %c0_40 = arith.constant 0 : index
      %c0_41 = arith.constant 0 : index
      %60 = vector.load %arg15[%c0_40, %c0_41] : memref<32x32xbf16, #tpu.memory_space<vmem>>, vector<32x32xbf16>
      %cst_42 = arith.constant dense<0.000000e+00> : vector<8x32xf32>
      %61 = tpu.matmul %59, %60, %cst_42 {dimension_numbers = #tpu.dot_dimension_numbers<[1], [0], [0], [1], [0, 0, 1, 1], [], []>} : vector<8x32xbf16>, vector<32x32xbf16>, vector<8x32xf32> -> vector<8x32xf32>
      %c0_43 = arith.constant 0 : index
      %c0_44 = arith.constant 0 : index
      %62 = vector.load %arg16[%c0_43, %c0_44] : memref<1x32xf32, #tpu.memory_space<vmem>>, vector<1x32xf32>
      %63 = vector.broadcast %62 : vector<1x32xf32> to vector<8x32xf32>
      %64 = arith.addf %61, %63 : vector<8x32xf32>
      %65 = math.tanh %64 : vector<8x32xf32>
      %66 = arith.addf %65, %36 : vector<8x32xf32>
      %67 = tpu.concatenate %36, %66, %36, %37 in 1 : vector<8x32xf32>, vector<8x32xf32>, vector<8x32xf32>, vector<8x32xf32> -> vector<8x128xf32>
      %c0_45 = arith.constant 0 : index
      %c0_46 = arith.constant 0 : index
      %68 = vector.load %arg17[%c0_45, %c0_46] : memref<8x128xf32, #tpu.memory_space<vmem>>, vector<8x128xf32>
      tpu.vector_store %arg17[%c0_45, %c0_46], %67 {strides = array<i32>} : memref<8x128xf32, #tpu.memory_space<vmem>>, vector<8x128xf32>,
    } else {
    }
    return
  }
  func.func @transform_0(%arg0: i32, %arg1: i32) -> (i32, i32) {
    %c0_i32 = arith.constant 0 : i32
    return %arg0, %arg1 : i32, i32
  }
  func.func @transform_1(%arg0: i32, %arg1: i32) -> (i32, i32) {
    %c0_i32 = arith.constant 0 : i32
    %c0_i32_0 = arith.constant 0 : i32
    return %arg1, %c0_i32 : i32, i32
  }
  func.func @transform_2(%arg0: i32, %arg1: i32) -> (i32, i32) {
    %c0_i32 = arith.constant 0 : i32
    %c0_i32_0 = arith.constant 0 : i32
    %c0_i32_1 = arith.constant 0 : i32
    return %c0_i32, %c0_i32_0 : i32, i32
  }
  func.func @transform_3(%arg0: i32, %arg1: i32) -> (i32, i32) {
    %c0_i32 = arith.constant 0 : i32
    %c0_i32_0 = arith.constant 0 : i32
    %c0_i32_1 = arith.constant 0 : i32
    return %c0_i32, %c0_i32_0 : i32, i32
  }
  func.func @transform_4(%arg0: i32, %arg1: i32) -> (i32, i32) {
    %c0_i32 = arith.constant 0 : i32
    %c0_i32_0 = arith.constant 0 : i32
    %c0_i32_1 = arith.constant 0 : i32
    return %c0_i32, %c0_i32_0 : i32, i32
  }
  func.func @transform_5(%arg0: i32, %arg1: i32) -> (i32, i32) {
    %c0_i32 = arith.constant 0 : i32
    %c0_i32_0 = arith.constant 0 : i32
    %c0_i32_1 = arith.constant 0 : i32
    return %c0_i32, %c0_i32_0 : i32, i32
  }
  func.func @transform_6(%arg0: i32, %arg1: i32) -> (i32, i32) {
    %c0_i32 = arith.constant 0 : i32
    %c0_i32_0 = arith.constant 0 : i32
    %c0_i32_1 = arith.constant 0 : i32
    return %c0_i32, %c0_i32_0 : i32, i32
  }
  func.func @transform_7(%arg0: i32, %arg1: i32) -> (i32, i32) {
    %c0_i32 = arith.constant 0 : i32
    %c0_i32_0 = arith.constant 0 : i32
    %c0_i32_1 = arith.constant 0 : i32
    return %c0_i32, %c0_i32_0 : i32, i32
  }
  func.func @transform_8(%arg0: i32, %arg1: i32) -> (i32, i32) {
    %c0_i32 = arith.constant 0 : i32
    %c0_i32_0 = arith.constant 0 : i32
    %c0_i32_1 = arith.constant 0 : i32
    return %c0_i32, %c0_i32_0 : i32, i32
  }
  func.func @transform_9(%arg0: i32, %arg1: i32) -> (i32, i32) {
    %c0_i32 = arith.constant 0 : i32
    %c0_i32_0 = arith.constant 0 : i32
    %c0_i32_1 = arith.constant 0 : i32
    return %c0_i32, %c0_i32_0 : i32, i32
  }
  func.func @transform_10(%arg0: i32, %arg1: i32) -> (i32, i32) {
    %c0_i32 = arith.constant 0 : i32
    %c0_i32_0 = arith.constant 0 : i32
    %c0_i32_1 = arith.constant 0 : i32
    return %c0_i32, %c0_i32_0 : i32, i32
  }
  func.func @transform_11(%arg0: i32, %arg1: i32) -> (i32, i32) {
    %c0_i32 = arith.constant 0 : i32
    %c0_i32_0 = arith.constant 0 : i32
    %c0_i32_1 = arith.constant 0 : i32
    return %c0_i32, %c0_i32_0 : i32, i32
  }
  func.func @transform_12(%arg0: i32, %arg1: i32) -> (i32, i32) {
    %c0_i32 = arith.constant 0 : i32
    %c0_i32_0 = arith.constant 0 : i32
    %c0_i32_1 = arith.constant 0 : i32
    return %c0_i32, %c0_i32_0 : i32, i32
  }
  func.func @transform_13(%arg0: i32, %arg1: i32) -> (i32, i32) {
    %c0_i32 = arith.constant 0 : i32
    %c0_i32_0 = arith.constant 0 : i32
    %c0_i32_1 = arith.constant 0 : i32
    return %c0_i32, %c0_i32_0 : i32, i32
  }
  func.func @transform_14(%arg0: i32, %arg1: i32) -> (i32, i32) {
    %c0_i32 = arith.constant 0 : i32
    %c0_i32_0 = arith.constant 0 : i32
    %c0_i32_1 = arith.constant 0 : i32
    return %c0_i32, %c0_i32_0 : i32, i32
  }
  func.func @transform_15(%arg0: i32, %arg1: i32) -> (i32, i32) {
    %c0_i32 = arith.constant 0 : i32
    %c0_i32_0 = arith.constant 0 : i32
    return %arg0, %c0_i32 : i32, i32
  }
}

module attributes {stable_mosaic.version = 11 : i64} {
  func.func @_decode_softmax_kernel(%arg0: i32, %arg1: i32, %arg2: i32, %arg3: memref<8x32xf32, #tpu.memory_space<vmem>>, %arg4: memref<32x128xbf16, #tpu.memory_space<vmem>>, %arg5: memref<1x128xf32, #tpu.memory_space<vmem>>, %arg6: memref<8x128xf32, #tpu.memory_space<vmem>>, %arg7: memref<2x8x128xf32, #tpu.memory_space<vmem>>, %arg8: memref<2x8x1xf32, #tpu.memory_space<vmem>>, %arg9: memref<8x1xf32, #tpu.memory_space<vmem>>, %arg10: memref<8x1xf32, #tpu.memory_space<vmem>>) attributes {dimension_semantics = [#tpu.dimension_semantics<parallel>, #tpu.dimension_semantics<arbitrary>, #tpu.dimension_semantics<arbitrary>], iteration_bounds = array<i64: 1, 2, 2>, scalar_prefetch = 0 : i64, scratch_operands = 4 : i64, tpu.core_type = #tpu.core_type<tc>, window_params = [{transform_indices = @transform_0, window_bounds = array<i64: 8, 32>}, {transform_indices = @transform_1, window_bounds = array<i64: 32, 128>}, {transform_indices = @transform_2, window_bounds = array<i64: 1, 128>}, {transform_indices = @transform_3, window_bounds = array<i64: 8, 128>}]} {
    %c0_i32 = arith.constant 0 : i32
    %0 = arith.cmpi eq, %arg1, %c0_i32 : i32
    %c0_i32_0 = arith.constant 0 : i32
    %1 = arith.cmpi eq, %arg2, %c0_i32_0 : i32
    %2 = arith.andi %0, %1 : i1
    %3 = arith.extui %2 : i1 to i32
    %c0_i32_1 = arith.constant 0 : i32
    %4 = arith.cmpi ne, %3, %c0_i32_1 : i32
    scf.if %4 {
      %cst = arith.constant 0xFF800000 : f32
      %11 = vector.broadcast %cst : f32 to vector<8x1xf32>
      %c0 = arith.constant 0 : index
      %c0_5 = arith.constant 0 : index
      %12 = vector.load %arg9[%c0, %c0_5] : memref<8x1xf32, #tpu.memory_space<vmem>>, vector<8x1xf32>
      tpu.vector_store %arg9[%c0, %c0_5], %11 {strides = array<i32>} : memref<8x1xf32, #tpu.memory_space<vmem>>, vector<8x1xf32>,
      %cst_6 = arith.constant 0.000000e+00 : f32
      %13 = vector.broadcast %cst_6 : f32 to vector<8x1xf32>
      %c0_7 = arith.constant 0 : index
      %c0_8 = arith.constant 0 : index
      %14 = vector.load %arg10[%c0_7, %c0_8] : memref<8x1xf32, #tpu.memory_space<vmem>>, vector<8x1xf32>
      tpu.vector_store %arg10[%c0_7, %c0_8], %13 {strides = array<i32>} : memref<8x1xf32, #tpu.memory_space<vmem>>, vector<8x1xf32>,
    } else {
    }
    %c0_i32_2 = arith.constant 0 : i32
    %5 = arith.cmpi eq, %arg1, %c0_i32_2 : i32
    %6 = arith.extui %5 : i1 to i32
    %c0_i32_3 = arith.constant 0 : i32
    %7 = arith.cmpi ne, %6, %c0_i32_3 : i32
    scf.if %7 {
      %c0 = arith.constant 0 : index
      %c0_5 = arith.constant 0 : index
      %11 = vector.load %arg3[%c0, %c0_5] : memref<8x32xf32, #tpu.memory_space<vmem>>, vector<8x32xf32>
      %12 = arith.truncf %11 : vector<8x32xf32> to vector<8x32xbf16>
      %c0_6 = arith.constant 0 : index
      %c0_7 = arith.constant 0 : index
      %13 = vector.load %arg4[%c0_6, %c0_7] : memref<32x128xbf16, #tpu.memory_space<vmem>>, vector<32x128xbf16>
      %cst = arith.constant dense<0.000000e+00> : vector<8x128xf32>
      %14 = tpu.matmul %12, %13, %cst {dimension_numbers = #tpu.dot_dimension_numbers<[1], [0], [0], [1], [0, 0, 1, 1], [], []>} : vector<8x32xbf16>, vector<32x128xbf16>, vector<8x128xf32> -> vector<8x128xf32>
      %c0_8 = arith.constant 0 : index
      %c0_9 = arith.constant 0 : index
      %15 = vector.load %arg5[%c0_8, %c0_9] : memref<1x128xf32, #tpu.memory_space<vmem>>, vector<1x128xf32>
      %16 = vector.broadcast %15 : vector<1x128xf32> to vector<8x128xf32>
      %17 = arith.addf %14, %16 : vector<8x128xf32>
      %cst_10 = arith.constant dense<0xFF800000> : vector<8xf32>
      %18 = vector.multi_reduction <maximumf>, %17, %cst_10 [1] : vector<8x128xf32> to vector<8xf32>
      %19 = vector.shape_cast %18 : vector<8xf32> to vector<8x1xf32>
      %20 = vector.broadcast %19 : vector<8x1xf32> to vector<8x128xf32>
      %21 = arith.subf %17, %20 : vector<8x128xf32>
      %22 = math.exp %21 : vector<8x128xf32>
      %23 = arith.index_cast %arg2 : i32 to index
      %c0_11 = arith.constant 0 : index
      %c0_12 = arith.constant 0 : index
      %24 = vector.load %arg7[%23, %c0_11, %c0_12] : memref<2x8x128xf32, #tpu.memory_space<vmem>>, vector<1x8x128xf32>
      %25 = vector.shape_cast %24 : vector<1x8x128xf32> to vector<8x128xf32>
      %26 = vector.shape_cast %22 : vector<8x128xf32> to vector<1x8x128xf32>
      tpu.vector_store %arg7[%23, %c0_11, %c0_12], %26 {strides = array<i32>} : memref<2x8x128xf32, #tpu.memory_space<vmem>>, vector<1x8x128xf32>,
      %27 = arith.index_cast %arg2 : i32 to index
      %c0_13 = arith.constant 0 : index
      %c0_14 = arith.constant 0 : index
      %28 = vector.load %arg8[%27, %c0_13, %c0_14] : memref<2x8x1xf32, #tpu.memory_space<vmem>>, vector<1x8x1xf32>
      %29 = vector.shape_cast %28 : vector<1x8x1xf32> to vector<8x1xf32>
      %30 = vector.shape_cast %19 : vector<8x1xf32> to vector<1x8x1xf32>
      tpu.vector_store %arg8[%27, %c0_13, %c0_14], %30 {strides = array<i32>} : memref<2x8x1xf32, #tpu.memory_space<vmem>>, vector<1x8x1xf32>,
      %c0_15 = arith.constant 0 : index
      %c0_16 = arith.constant 0 : index
      %31 = vector.load %arg9[%c0_15, %c0_16] : memref<8x1xf32, #tpu.memory_space<vmem>>, vector<8x1xf32>
      %32 = arith.maximumf %31, %19 : vector<8x1xf32>
      %c0_17 = arith.constant 0 : index
      %c0_18 = arith.constant 0 : index
      %33 = vector.load %arg10[%c0_17, %c0_18] : memref<8x1xf32, #tpu.memory_space<vmem>>, vector<8x1xf32>
      %34 = arith.subf %31, %32 : vector<8x1xf32>
      %35 = math.exp %34 : vector<8x1xf32>
      %36 = arith.mulf %33, %35 : vector<8x1xf32>
      %cst_19 = arith.constant dense<0.000000e+00> : vector<8xf32>
      %37 = vector.multi_reduction <add>, %22, %cst_19 [1] : vector<8x128xf32> to vector<8xf32>
      %38 = vector.shape_cast %37 : vector<8xf32> to vector<8x1xf32>
      %39 = arith.subf %19, %32 : vector<8x1xf32>
      %40 = math.exp %39 : vector<8x1xf32>
      %41 = arith.mulf %38, %40 : vector<8x1xf32>
      %42 = arith.addf %36, %41 : vector<8x1xf32>
      %c0_20 = arith.constant 0 : index
      %c0_21 = arith.constant 0 : index
      %43 = vector.load %arg10[%c0_20, %c0_21] : memref<8x1xf32, #tpu.memory_space<vmem>>, vector<8x1xf32>
      tpu.vector_store %arg10[%c0_20, %c0_21], %42 {strides = array<i32>} : memref<8x1xf32, #tpu.memory_space<vmem>>, vector<8x1xf32>,
      %c0_22 = arith.constant 0 : index
      %c0_23 = arith.constant 0 : index
      %44 = vector.load %arg9[%c0_22, %c0_23] : memref<8x1xf32, #tpu.memory_space<vmem>>, vector<8x1xf32>
      tpu.vector_store %arg9[%c0_22, %c0_23], %32 {strides = array<i32>} : memref<8x1xf32, #tpu.memory_space<vmem>>, vector<8x1xf32>,
    } else {
    }
    %c1_i32 = arith.constant 1 : i32
    %8 = arith.cmpi eq, %arg1, %c1_i32 : i32
    %9 = arith.extui %8 : i1 to i32
    %c0_i32_4 = arith.constant 0 : i32
    %10 = arith.cmpi ne, %9, %c0_i32_4 : i32
    scf.if %10 {
      %11 = arith.index_cast %arg2 : i32 to index
      %c0 = arith.constant 0 : index
      %c0_5 = arith.constant 0 : index
      %12 = vector.load %arg8[%11, %c0, %c0_5] : memref<2x8x1xf32, #tpu.memory_space<vmem>>, vector<1x8x1xf32>
      %13 = vector.shape_cast %12 : vector<1x8x1xf32> to vector<8x1xf32>
      %c0_6 = arith.constant 0 : index
      %c0_7 = arith.constant 0 : index
      %14 = vector.load %arg9[%c0_6, %c0_7] : memref<8x1xf32, #tpu.memory_space<vmem>>, vector<8x1xf32>
      %15 = arith.subf %13, %14 : vector<8x1xf32>
      %16 = math.exp %15 : vector<8x1xf32>
      %c0_8 = arith.constant 0 : index
      %c0_9 = arith.constant 0 : index
      %17 = vector.load %arg10[%c0_8, %c0_9] : memref<8x1xf32, #tpu.memory_space<vmem>>, vector<8x1xf32>
      %18 = arith.divf %16, %17 : vector<8x1xf32>
      %19 = arith.index_cast %arg2 : i32 to index
      %c0_10 = arith.constant 0 : index
      %c0_11 = arith.constant 0 : index
      %20 = vector.load %arg7[%19, %c0_10, %c0_11] : memref<2x8x128xf32, #tpu.memory_space<vmem>>, vector<1x8x128xf32>
      %21 = vector.shape_cast %20 : vector<1x8x128xf32> to vector<8x128xf32>
      %22 = vector.broadcast %18 : vector<8x1xf32> to vector<8x128xf32>
      %23 = arith.mulf %21, %22 : vector<8x128xf32>
      %c0_12 = arith.constant 0 : index
      %c0_13 = arith.constant 0 : index
      %24 = vector.load %arg6[%c0_12, %c0_13] : memref<8x128xf32, #tpu.memory_space<vmem>>, vector<8x128xf32>
      tpu.vector_store %arg6[%c0_12, %c0_13], %23 {strides = array<i32>} : memref<8x128xf32, #tpu.memory_space<vmem>>, vector<8x128xf32>,
    } else {
    }
    return
  }
  func.func @transform_0(%arg0: i32, %arg1: i32, %arg2: i32) -> (i32, i32) {
    %c0_i32 = arith.constant 0 : i32
    %c0_i32_0 = arith.constant 0 : i32
    return %arg0, %c0_i32 : i32, i32
  }
  func.func @transform_1(%arg0: i32, %arg1: i32, %arg2: i32) -> (i32, i32) {
    %c1_i32 = arith.constant 1 : i32
    %0 = arith.subi %c1_i32, %arg1 : i32
    %1 = arith.muli %arg2, %0 : i32
    %c0_i32 = arith.constant 0 : i32
    %c0_i32_0 = arith.constant 0 : i32
    return %c0_i32, %1 : i32, i32
  }
  func.func @transform_2(%arg0: i32, %arg1: i32, %arg2: i32) -> (i32, i32) {
    %c1_i32 = arith.constant 1 : i32
    %0 = arith.subi %c1_i32, %arg1 : i32
    %1 = arith.muli %arg2, %0 : i32
    %c0_i32 = arith.constant 0 : i32
    %c0_i32_0 = arith.constant 0 : i32
    return %c0_i32, %1 : i32, i32
  }
  func.func @transform_3(%arg0: i32, %arg1: i32, %arg2: i32) -> (i32, i32) {
    %0 = arith.muli %arg2, %arg1 : i32
    %c0_i32 = arith.constant 0 : i32
    return %arg0, %0 : i32, i32
  }
}

</mosaic_0001>

<llo_original>
// kernel: _lambda_.3
$region0: #{_lambda_.3}
  #allocation0 [shape = 'u32[]', space=smem, size = 0x4, offset = 0x4, fixed_abs, tag = 'smem constant byte address 0x4 - core index']
  #allocation1 [shape = 'u32[144,128]{1,0:T(1,128)}', space=vmem, size = 0x12000, scoped, tag = 'internal scratch']
  #allocation2 [shape = 'f32[2,8,128]{2,1,0:T(8,128)}', space=vmem, size = 0x2000, scoped, tag = 'scratch operand']
  #allocation3 [shape = 'f32[2,8,1]{2,1,0:T(8,128)}', space=vmem, size = 0x2000, scoped, tag = 'scratch operand']
  #allocation4 [shape = 'f32[8,1]{1,0:T(8,128)}', space=vmem, size = 0x1000, scoped, tag = 'scratch operand']
  #allocation5 [shape = 'f32[8,1]{1,0:T(8,128)}', space=vmem, size = 0x1000, scoped, tag = 'scratch operand']
  %s0 = inlined_call_operand.vmem [shape: f32[8,32], index: 0, kind: input, shape index: {}]
  %s1 = inlined_call_operand.vmem [shape: bf16[32,256], index: 1, kind: input, shape index: {}]
  %s2 = inlined_call_operand.vmem [shape: f32[1,256], index: 2, kind: input, shape index: {}]
  %s3 = inlined_call_operand.hbm [shape: f32[8,256], index: 3, kind: output, shape index: {}]
  %s4 = sld [smem:[#allocation0]]
  $region98: #{_lambda_.3} parent=0
    _
  %s6 = ssub.s32 1, %s4
  %s7 = scalar_select 0, %s6, %s4
  $region1: #{_lambda_.3} parent=0
    #allocation6 [shape = 'u8[16384]{0}', space=vmem, size = 0x4000, scoped, tag = 'input window, operand 1']
    #allocation7 [shape = 'u8[8192]{0}', space=vmem, size = 0x2000, scoped, tag = 'output window, operand 0']
    #allocation8 [shape = 's32[2]{0}', space=sflag, size = 0x8, scoped, tag = 'scoped memory for _lambda_.3']
    %8 = vsyncpa [#allocation8], 0
    %s9 = scalar_lea.sflag [#allocation8], 1
    %10 = vsyncpa %s9, 0
    loop: start=0, step=1, limit=6
    $region2: #{_lambda_.3} parent=1 // loop_pre_header
      _
    $region3: #{_lambda_.3} parent=1 // loop_header
      %s12 = sphi 0, %s16
      %p13 = scmp.ge.s32.totalorder %s12, 6
      %s19 = sphi 0, %s38
      %s20 = sphi 0, %s34
      %s21 = sphi 0, %s30
      %s22 = sphi 0, %s19
      %s23 = sphi 0, %s20
      %s24 = sphi 0, %s21
      %s25 = sphi 0, %s22
      %s26 = sphi 0, %s23
      %s27 = sphi 0, %s24
      %s41 = sphi 0, %s43
      %s44 = sphi 0, %s41
      %s45 = sphi 0, %s44
      %s61 = sphi 0, %s45
      %s71 = sphi 0, %s73
      %s74 = sphi 0, %s71
      %s75 = sphi 0, %s74
      %s91 = sphi 0, %s75
      %s101 = sphi 0, %s103
      %s104 = sphi 0, %s101
      %s105 = sphi 0, %s104
      %s121 = sphi 0, %s105
      %s131 = sphi 0, %s133
      %s134 = sphi 0, %s131
      %s135 = sphi 0, %s134
      %s151 = sphi 0, %s135
    $region4: #{_lambda_.3} parent=1 // loop_header_branch
      %15 = sbr.rel (%p13) target = $region8
    $region5: #{_lambda_.3} parent=1 // loop_body
      %s17 = ssub.s32 %s12, 1
      %s18 = ssub.s32 %s12, 2
      %s28 = sadd.s32 1, %s21
      %p29 = scmp.ge.s32.totalorder %s28, 2
      %s30 = scalar_select %p29, 0, %s28
      %s31 = sadd.s32 1, %s20
      %s32 = scalar_select %p29, %s31, %s20
      %p33 = scmp.ge.s32.totalorder %s32, 2
      %s34 = scalar_select %p33, 0, %s32
      %s35 = sadd.s32 1, %s19
      %s36 = scalar_select %p33, %s35, %s19
      %p37 = scmp.ge.s32.totalorder %s36, 1
      %s38 = scalar_select %p37, 0, %s36
      %s39 = ssub.s32 %s19, %s38
      %p40 = scmp.eq.s32.totalorder %s39, 0
      %s42 = sadd.s32 %s41, 1
      %s43 = scalar_select %p40, %s41, %s42
      %p46 = pneg %p40
      %p47 = scmp.eq.s32.totalorder %s12, 3
      %p48 = por %p46, %p47
      %p49 = scmp.ne.s32.totalorder %s41, %s44
      %p50 = scmp.eq.s32.totalorder %s12, 0
      %p51 = por %p49, %p50
      %p52 = scmp.ne.s32.totalorder %s41, %s44
      %p53 = scmp.eq.s32.totalorder %s17, 3
      %p54 = por %p52, %p53
      %p55 = scmp.ne.s32.totalorder %s44, %s45
      %p56 = scmp.eq.s32.totalorder %s17, 0
      %p57 = por %p55, %p56
      %p58 = scmp.ne.s32.totalorder %s44, %s45
      %p59 = scmp.eq.s32.totalorder %s18, 3
      %p60 = por %p58, %p59
      %p62 = scmp.ne.s32.totalorder %s45, %s61
      %p63 = scmp.eq.s32.totalorder %s18, 0
      %p64 = por %p62, %p63
      %s65 = ssub.s32 1, %s20
      %s66 = smul.u32 %s21, %s65
      %s67 = ssub.s32 1, %s34
      %s68 = smul.u32 %s30, %s67
      %s69 = ssub.s32 %s66, %s68
      %p70 = scmp.eq.s32.totalorder %s69, 0
      %s72 = sadd.s32 %s71, 1
      %s73 = scalar_select %p70, %s71, %s72
      %p76 = pneg %p70
      %p77 = scmp.eq.s32.totalorder %s12, 3
      %p78 = por %p76, %p77
      %p79 = scmp.ne.s32.totalorder %s71, %s74
      %p80 = scmp.eq.s32.totalorder %s12, 0
      %p81 = por %p79, %p80
      %p82 = scmp.ne.s32.totalorder %s71, %s74
      %p83 = scmp.eq.s32.totalorder %s17, 3
      %p84 = por %p82, %p83
      %p85 = scmp.ne.s32.totalorder %s74, %s75
      %p86 = scmp.eq.s32.totalorder %s17, 0
      %p87 = por %p85, %p86
      %p88 = scmp.ne.s32.totalorder %s74, %s75
      %p89 = scmp.eq.s32.totalorder %s18, 3
      %p90 = por %p88, %p89
      %p92 = scmp.ne.s32.totalorder %s75, %s91
      %p93 = scmp.eq.s32.totalorder %s18, 0
      %p94 = por %p92, %p93
      %s95 = ssub.s32 1, %s20
      %s96 = smul.u32 %s21, %s95
      %s97 = ssub.s32 1, %s34
      %s98 = smul.u32 %s30, %s97
      %s99 = ssub.s32 %s96, %s98
      %p100 = scmp.eq.s32.totalorder %s99, 0
      %s102 = sadd.s32 %s101, 1
      %s103 = scalar_select %p100, %s101, %s102
      %p106 = pneg %p100
      %p107 = scmp.eq.s32.totalorder %s12, 3
      %p108 = por %p106, %p107
      %p109 = scmp.ne.s32.totalorder %s101, %s104
      %p110 = scmp.eq.s32.totalorder %s12, 0
      %p111 = por %p109, %p110
      %p112 = scmp.ne.s32.totalorder %s101, %s104
      %p113 = scmp.eq.s32.totalorder %s17, 3
      %p114 = por %p112, %p113
      %p115 = scmp.ne.s32.totalorder %s104, %s105
      %p116 = scmp.eq.s32.totalorder %s17, 0
      %p117 = por %p115, %p116
      %p118 = scmp.ne.s32.totalorder %s104, %s105
      %p119 = scmp.eq.s32.totalorder %s18, 3
      %p120 = por %p118, %p119
      %p122 = scmp.ne.s32.totalorder %s105, %s121
      %p123 = scmp.eq.s32.totalorder %s18, 0
      %p124 = por %p122, %p123
      %s125 = smul.u32 %s21, %s20
      %s126 = smul.u32 %s30, %s34
      %s127 = ssub.s32 %s19, %s38
      %s128 = ssub.s32 %s125, %s126
      %s129 = sor.u32 %s127, %s128
      %p130 = scmp.eq.s32.totalorder %s129, 0
      %s132 = sadd.s32 %s131, 1
      %s133 = scalar_select %p130, %s131, %s132
      %p136 = pneg %p130
      %p137 = scmp.eq.s32.totalorder %s12, 3
      %p138 = por %p136, %p137
      %p139 = scmp.ne.s32.totalorder %s131, %s134
      %p140 = scmp.eq.s32.totalorder %s12, 0
      %p141 = por %p139, %p140
      %p142 = scmp.ne.s32.totalorder %s131, %s134
      %p143 = scmp.eq.s32.totalorder %s17, 3
      %p144 = por %p142, %p143
      %p145 = scmp.ne.s32.totalorder %s134, %s135
      %p146 = scmp.eq.s32.totalorder %s17, 0
      %p147 = por %p145, %p146
      %p148 = scmp.ne.s32.totalorder %s134, %s135
      %p149 = scmp.eq.s32.totalorder %s18, 3
      %p150 = por %p148, %p149
      %p152 = scmp.ne.s32.totalorder %s135, %s151
      %p153 = scmp.eq.s32.totalorder %s18, 0
      %p154 = por %p152, %p153
      %p155 = scmp.le.s32.totalorder 1, %s12
      %p156 = scmp.lt.s32.totalorder %s12, 5
      %p157 = pnand %p155, %p156
      %p158 = pneg %p157
      // Predicated region
      $region9: #{_lambda_.3} parent=5 // pred_check
        _
      $region10: #{_lambda_.3} parent=5 // pred_check_branch
        %160 = sbr.rel (%p157) target = $region12
      $region11: #{_lambda_.3} parent=5 // pred_region
        %s161 = ssub.s32 %s12, 1
        // Predicated region
        $region13: #{_lambda_.3} parent=11 // pred_check
          %p162 = pneg %p57
        $region14: #{_lambda_.3} parent=11 // pred_check_branch
          %164 = sbr.rel (%p162) target = $region16
        $region15: #{_lambda_.3} parent=11 // pred_region
          %p165 = scmp.lt.s32.totalorder %s22, 0
          %s166 = scalar_select %p165, %s22, 0
          %s167 = smul.addr %s166, 8
          %s168 = scalar_lea.vmem %s0, %s167
        $region16: #{_lambda_.3} parent=11 // pred_fallthru
          _
      $region12: #{_lambda_.3} parent=5 // pred_fallthru
        _
      %p169 = scmp.lt.s32.totalorder %s12, 4
      // Predicated region
      $region17: #{_lambda_.3} parent=5 // pred_check
        %p170 = pneg %p169
      $region18: #{_lambda_.3} parent=5 // pred_check_branch
        %172 = sbr.rel (%p170) target = $region20
      $region19: #{_lambda_.3} parent=5 // pred_region
        // Predicated region
        $region21: #{_lambda_.3} parent=19 // pred_check
          %p173 = pneg %p81
        $region22: #{_lambda_.3} parent=19 // pred_check_branch
          %175 = sbr.rel (%p173) target = $region24
        $region23: #{_lambda_.3} parent=19 // pred_region
          %s176 = sand.u32 %s71, 1
          %s177 = sand.u32 %s71, 1
          %s178 = smul.addr %s177, 16
          %s179 = scalar_lea.vmem [#allocation6], %s178
          %s180 = ssub.s32 1, %s20
          %s181 = smul.u32 %s21, %s180
          %s182 = smul.addr %s181, 4
          %s183 = scalar_lea.vmem %s1, %s182
          // Predicated region
          $region25: #{_lambda_.3} parent=23 // pred_check
            _
          $region26: #{_lambda_.3} parent=23 // pred_check_branch
            %185 = sbr.rel (0) target = $region28
          $region27: #{_lambda_.3} parent=23 // pred_region
            // Predicated region
            $region29: #{_lambda_.3} parent=27 // pred_check
              _
            $region30: #{_lambda_.3} parent=27 // pred_check_branch
              %187 = sbr.rel target = $region32
            $region31: #{_lambda_.3} parent=27 // pred_region
              // Predicated region
              $region44: #{_lambda_.3} parent=31 // pred_check
                _
              $region45: #{_lambda_.3} parent=31 // pred_check_branch
                %208 = sbr.rel (0) target = $region47
              $region46: #{_lambda_.3} parent=31 // pred_region
                loop: start=0, step=1, limit=1
                $region48: #{_lambda_.3} parent=46 // loop_pre_header
                  _
                $region49: #{_lambda_.3} parent=46 // loop_header
                  %s210 = sphi 0, %s214
                  %p211 = scmp.ge.s32.totalorder %s210, 1
                  %s215 = sphi %s183, %s183
                  %s216 = sphi %s179, %s179
                $region50: #{_lambda_.3} parent=46 // loop_header_branch
                  %213 = sbr.rel (%p211) target = $region54
                $region51: #{_lambda_.3} parent=46 // loop_body
                  _
                $region52: #{_lambda_.3} parent=46 // loop_footer
                  %s214 = sadd.s32 1, %s210
                $region53: #{_lambda_.3} parent=46 // loop_footer_branch
                  %209 = sbr.rel target = $region49
                $region54: #{_lambda_.3} parent=46 // loop_exit
                  _
                loop: start=0, step=1, limit=1
                $region55: #{_lambda_.3} parent=46 // loop_pre_header
                  _
                $region56: #{_lambda_.3} parent=46 // loop_header
                  %s219 = sphi 0, %s223
                  %p220 = scmp.ge.s32.totalorder %s219, 1
                  %s224 = sphi %s183, %s183
                  %s225 = sphi %s179, %s179
                $region57: #{_lambda_.3} parent=46 // loop_header_branch
                  %222 = sbr.rel (%p220) target = $region61
                $region58: #{_lambda_.3} parent=46 // loop_body
                  %v226 = vld [vmem:[%s224] sm:$0xf]
                  %227 = vst [vmem:[%s225] sm:$0xf] %v226
                  %v228 = vld [vmem:[%s224 + $0x8] sm:$0xf]
                  %229 = vst [vmem:[%s225 + $0x4] sm:$0xf] %v228
                  %v230 = vld [vmem:[%s224 + $0x10] sm:$0xf]
                  %231 = vst [vmem:[%s225 + $0x8] sm:$0xf] %v230
                  %v232 = vld [vmem:[%s224 + $0x18] sm:$0xf]
                  %233 = vst [vmem:[%s225 + $0xc] sm:$0xf] %v232
                $region59: #{_lambda_.3} parent=46 // loop_footer
                  %s223 = sadd.s32 1, %s219
                $region60: #{_lambda_.3} parent=46 // loop_footer_branch
                  %218 = sbr.rel target = $region56
                $region61: #{_lambda_.3} parent=46 // loop_exit
                  _
              $region47: #{_lambda_.3} parent=31 // pred_fallthru
                _
            $region32: #{_lambda_.3} parent=27 // pred_fallthru
              _
            // Predicated region
            $region33: #{_lambda_.3} parent=27 // pred_check
              _
            $region34: #{_lambda_.3} parent=27 // pred_check_branch
              %189 = sbr.rel (0) target = $region36
            $region35: #{_lambda_.3} parent=27 // pred_region
              loop: start=0, step=1, limit=1
              $region37: #{_lambda_.3} parent=35 // loop_pre_header
                _
              $region38: #{_lambda_.3} parent=35 // loop_header
                %s192 = sphi 0, %s196
                %p193 = scmp.ge.s32.totalorder %s192, 1
                %s197 = sphi %s183, %s183
                %s198 = sphi %s179, %s179
              $region39: #{_lambda_.3} parent=35 // loop_header_branch
                %195 = sbr.rel (%p193) target = $region43
              $region40: #{_lambda_.3} parent=35 // loop_body
                %v199 = vld [vmem:[%s197] sm:$0xf]
                %200 = vst [vmem:[%s198] sm:$0xf] %v199
                %v201 = vld [vmem:[%s197 + $0x8] sm:$0xf]
                %202 = vst [vmem:[%s198 + $0x4] sm:$0xf] %v201
                %v203 = vld [vmem:[%s197 + $0x10] sm:$0xf]
                %204 = vst [vmem:[%s198 + $0x8] sm:$0xf] %v203
                %v205 = vld [vmem:[%s197 + $0x18] sm:$0xf]
                %206 = vst [vmem:[%s198 + $0xc] sm:$0xf] %v205
              $region41: #{_lambda_.3} parent=35 // loop_footer
                %s196 = sadd.s32 1, %s192
              $region42: #{_lambda_.3} parent=35 // loop_footer_branch
                %191 = sbr.rel target = $region38
              $region43: #{_lambda_.3} parent=35 // loop_exit
                _
            $region36: #{_lambda_.3} parent=27 // pred_fallthru
              _
          $region28: #{_lambda_.3} parent=23 // pred_fallthru
            _
          %234 = vnop
        $region24: #{_lambda_.3} parent=19 // pred_fallthru
          _
        // Predicated region
        $region62: #{_lambda_.3} parent=19 // pred_check
          %p235 = pneg %p111
        $region63: #{_lambda_.3} parent=19 // pred_check_branch
          %237 = sbr.rel (%p235) target = $region65
        $region64: #{_lambda_.3} parent=19 // pred_region
          %s238 = ssub.s32 1, %s20
          %s239 = smul.u32 %s21, %s238
          %p240 = scmp.lt.s32.totalorder %s239, 1
          %s241 = scalar_select %p240, %s239, 1
          %s242 = scalar_lea.vmem %s2, %s241
          %s243 = ssub.s32 1, %s20
          %s244 = smul.u32 %s21, %s243
        $region65: #{_lambda_.3} parent=19 // pred_fallthru
          _
      $region20: #{_lambda_.3} parent=5 // pred_fallthru
        _
      %p245 = scmp.le.s32.totalorder 1, %s12
      %p246 = scmp.lt.s32.totalorder %s12, 5
      %p247 = pnand %p245, %p246
      %p248 = pneg %p247
      // Predicated region
      $region66: #{_lambda_.3} parent=5 // pred_check
        _
      $region67: #{_lambda_.3} parent=5 // pred_check_branch
        %250 = sbr.rel (%p247) target = $region69
      $region68: #{_lambda_.3} parent=5 // pred_region
        %s251 = ssub.s32 %s12, 1
        %s252 = sand.u32 %s74, 1
        %s253 = sand.u32 %s74, 1
        %s254 = smul.addr %s253, 16
        %s255 = scalar_lea.vmem [#allocation6], %s254
        // Predicated region
        $region70: #{_lambda_.3} parent=68 // pred_check
          %p256 = pneg %p87
        $region71: #{_lambda_.3} parent=68 // pred_check_branch
          %258 = sbr.rel (%p256) target = $region73
        $region72: #{_lambda_.3} parent=68 // pred_region
          _
        $region73: #{_lambda_.3} parent=68 // pred_fallthru
          _
        %p259 = scmp.lt.s32.totalorder %s22, 0
        %s260 = scalar_select %p259, %s22, 0
        %s261 = smul.addr %s260, 8
        %s262 = scalar_lea.vmem %s0, %s261
        %p263 = pneg %p57
        %p264 = pneg %p54
        %s265 = sand.u32 %s74, 1
        %s266 = sand.u32 %s74, 1
        %s267 = smul.addr %s266, 16
        %s268 = scalar_lea.vmem [#allocation6], %s267
        %p269 = pneg %p87
        %p270 = pneg %p84
        %s271 = ssub.s32 1, %s23
        %s272 = smul.u32 %s24, %s271
        %p273 = scmp.lt.s32.totalorder %s272, 1
        %s274 = scalar_select %p273, %s272, 1
        %s275 = scalar_lea.vmem %s2, %s274
        %p276 = pneg %p117
        %p277 = pneg %p114
        %p278 = pneg %p147
        %p279 = pneg %p144
        %s280 = sand.u32 %s134, 1
        %s281 = scalar_lea.sflag [#allocation8], %s280
        %s282 = sand.u32 %s134, 1
        %s283 = smul.addr %s282, 8
        %s284 = scalar_lea.vmem [#allocation7], %s283
        %p285 = scmp.lt.s32.totalorder %s22, 0
        %s286 = scalar_select %p285, %s22, 0
        %s287 = smul.addr %s286, 8
        %s288 = scalar_lea.vmem %s0, %s287
        %s289 = ssub.s32 1, %s23
        %s290 = smul.u32 %s24, %s289
        %s291 = ssub.s32 1, %s23
        %s292 = smul.u32 %s24, %s291
        %p293 = scmp.lt.s32.totalorder %s292, 1
        %s294 = scalar_select %p293, %s292, 1
        %s295 = scalar_lea.vmem %s2, %s294
        %s296 = ssub.s32 1, %s23
        %s297 = smul.u32 %s24, %s296
        %s298 = smul.u32 %s24, %s23
        %p300 = scmp.eq.s32.totalorder %s23, 0
        %p301 = scmp.eq.s32.totalorder %s24, 0
        %p302 = pnand %p300, %p301
        %p303 = pneg %p302
        // Predicated region
        $region74: #{_lambda_.3} parent=68 // pred_check
          _
        $region75: #{_lambda_.3} parent=68 // pred_check_branch
          %305 = sbr.rel (%p302) target = $region77
        $region76: #{_lambda_.3} parent=68 // pred_region
          %vm306 = vcmask 7168
          %307 = vst.msk [vmem:[#allocation4] sm:$0xff] %vm306, -inf
          %308 = vst.msk [vmem:[#allocation5] sm:$0xff] %vm306, 0.0
        $region77: #{_lambda_.3} parent=68 // pred_fallthru
          _
        // Predicated region
        $region78: #{_lambda_.3} parent=68 // pred_check
          %p309 = pneg %p300
        $region79: #{_lambda_.3} parent=68 // pred_check_branch
          %311 = sbr.rel (%p309) target = $region81
        $region80: #{_lambda_.3} parent=68 // pred_region
          %v312 = vld [vmem:[%s288] sm:$0xff]
          %v313 = vpack.c.bf16 %v312, %v312
          %v314 = vld [vmem:[%s255] sm:$0xf]
          %v315 = vld [vmem:[%s255 + $0x4] sm:$0xf]
          %v316 = vld [vmem:[%s255 + $0x8] sm:$0xf]
          %v317 = vld [vmem:[%s255 + $0xc] sm:$0xf]
          %v318 = vld [vmem:[%s295] sm:$0x1]
          %v320 = vlaneseq
          %v321 = vshrl.u32 %v320, 7
          %v322 = vsub.s32 0, %v321
          %v323 = vrot.slane %v318, %v322
          %v329 = vunpack.c.l.b16 %v314
          %v330 = vunpack.c.l.b16 %v315
          %v331 = vunpack.c.l.b16 %v316
          %v332 = vunpack.c.l.b16 %v317
          %v333 = vpack.c.b16 %v330, %v329
          %v334 = vpack.c.b16 %v332, %v331
          %vm337 = vcmask 261120
          %v339 = vsel %vm337, %v313, 0
          %341 = vmatprep.subr.bf16.mxu0 0
          %342 = vmatpush1.bf16.msra.mxu0 %v333
          %343 = vmatprep.subr.bf16.mxu0 0
          %344 = vmatpush1.bf16.msra.mxu0 %v334
          %345 = vmatprep.subr.bf16.mxu0 0
          %346 = vmatpush1.bf16.msra.mxu0 0
          %347 = vmatprep.subr.bf16.mxu0 0
          %348 = vmatpush1.bf16.msra.mxu0 0
          %349 = vmatprep.subr.bf16.mxu0 0
          %350 = vmatpush1.bf16.msra.mxu0 0
          %351 = vmatprep.subr.bf16.mxu0 0
          %352 = vmatpush1.bf16.msra.mxu0 0
          %353 = vmatprep.subr.bf16.mxu0 0
          %354 = vmatpush1.bf16.msra.mxu0 0
          %355 = vmatprep.subr.bf16.mxu0 0
          %356 = vmatpush1.bf16.msra.mxu0 0
          %357 = vmatprep.subr.bf16.mxu0 0
          %358 = vmatpush1.bf16.msra.mxu0 0
          %359 = vmatprep.subr.bf16.mxu0 0
          %360 = vmatpush1.bf16.msra.mxu0 0
          %361 = vmatprep.subr.bf16.mxu0 0
          %362 = vmatpush1.bf16.msra.mxu0 0
          %363 = vmatprep.subr.bf16.mxu0 0
          %364 = vmatpush1.bf16.msra.mxu0 0
          %365 = vmatprep.subr.bf16.mxu0 0
          %366 = vmatpush1.bf16.msra.mxu0 0
          %367 = vmatprep.subr.bf16.mxu0 0
          %368 = vmatpush1.bf16.msra.mxu0 0
          %369 = vmatprep.subr.bf16.mxu0 0
          %370 = vmatpush1.bf16.msra.mxu0 0
          %371 = vmatprep.subr.bf16.mxu0 0
          %372 = vmatpush1.bf16.msra.mxu0 0
          %373 = vmatprep.mubr.bf16.mxu0 0
          %374 = vmatmul.mubr.bf16.gmra.mrb[0].mxu0 %v339
          %v375 = vpop.f32.mrb[0].mxu0
          %v376 = vadd.f32 %v323, %v375
          %v377 = vpop.f32.mrb[0].mxu0
          %v378 = vpop.f32.mrb[0].mxu0
          %v379 = vpop.f32.mrb[0].mxu0
          %380 = vdwg.mxu0
          %381 = vmax.xlane.f32.xlu0 %v376
          %v382 = vpop.xlane.xlu0 %381
          %v383 = vsub.f32 %v376, %v382
          %v384 = vmul.f32 %v383, 1.442695
          %v385 = vpow.pop %v384
          %s386 = smul.u32 %s24, 8
          %s387 = scalar_lea.vmem [#allocation2], %s386
          %388 = vst [vmem:[%s387] sm:$0xff] %v385
          %s389 = scalar_lea.vmem [#allocation3], %s386
          %vm390 = vcmask 7168
          %391 = vst.msk [vmem:[%s389] sm:$0xff] %vm390, %v382
          %v392 = vld [vmem:[#allocation4] sm:$0xff]
          %v393 = vmax.f32 %v392, %v382
          %v394 = vld [vmem:[#allocation5] sm:$0xff]
          %v395 = vsub.f32 %v392, %v393
          %v396 = vmul.f32 %v395, 1.442695
          %v397 = vpow.pop %v396
          %v398 = vmul.f32 %v394, %v397
          %399 = vadd.xlane.f32.xlu0 %v385
          %v400 = vpop.xlane.xlu0 %399
          %v401 = vsub.f32 %v382, %v393
          %v402 = vmul.f32 %v401, 1.442695
          %v403 = vpow.pop %v402
          %v404 = vmul.f32 %v400, %v403
          %v405 = vadd.f32 %v398, %v404
          %406 = vst.msk [vmem:[#allocation5] sm:$0xff] %vm390, %v405
          %407 = vst.msk [vmem:[#allocation4] sm:$0xff] %vm390, %v393
        $region81: #{_lambda_.3} parent=68 // pred_fallthru
          _
        %p408 = scmp.eq.s32.totalorder %s23, 1
        // Predicated region
        $region82: #{_lambda_.3} parent=68 // pred_check
          %p409 = pneg %p408
        $region83: #{_lambda_.3} parent=68 // pred_check_branch
          %411 = sbr.rel (%p409) target = $region85
        $region84: #{_lambda_.3} parent=68 // pred_region
          %s412 = smul.u32 %s24, 8
          %s413 = scalar_lea.vmem [#allocation3], %s412
          %v414 = vld [vmem:[%s413] sm:$0xff]
          %v415 = vld [vmem:[#allocation4] sm:$0xff]
          %v416 = vsub.f32 %v414, %v415
          %v417 = vmul.f32 %v416, 1.442695
          %v418 = vpow.pop %v417
          %v419 = vld [vmem:[#allocation5] sm:$0xff]
          %v420 = vrcp.pop %v419
          %v421 = vmul.f32 %v418, %v420
          %s422 = scalar_lea.vmem [#allocation2], %s412
          %v423 = vld [vmem:[%s422] sm:$0xff]
          %425 = vset.pattern.permute.xlu0 0
          %426 = vperm.xlu0 %425, %v421
          %v427 = vpop.permute.xlu0 %426
          %v429 = vmul.f32 %v423, %v427
          %430 = vst [vmem:[%s284] sm:$0xff] %v429
        $region85: #{_lambda_.3} parent=68 // pred_fallthru
          _
        %s431 = sand.u32 %s134, 1
        %s432 = scalar_lea.sflag [#allocation8], %s431
        %s433 = sand.u32 %s134, 1
        %s434 = smul.addr %s433, 8
        %s435 = scalar_lea.vmem [#allocation7], %s434
        // Predicated region
        $region86: #{_lambda_.3} parent=68 // pred_check
          %p436 = pneg %p144
        $region87: #{_lambda_.3} parent=68 // pred_check_branch
          %438 = sbr.rel (%p436) target = $region89
        $region88: #{_lambda_.3} parent=68 // pred_region
          %s439 = smul.u32 %s24, %s23
          %s441 = ssub.s32 128, 128
          %442 = vsyncadd %s432, %s441
          %s443 = smul.addr %s22, 2
          %s444 = sadd.s32 %s439, %s443
          %s445 = smul.addr %s444, 128
          %s446 = scalar_lea.hbm %s3, %s445
          %s448 = sshll.u32 %s435, 4
          %s449 = int_to_ptr.vmem [resolvable:$true] %s448
          %451 = dma.vmem_to_hbm [thread:$0]  %s449, 128, %s446, %s432
        $region89: #{_lambda_.3} parent=68 // pred_fallthru
          _
      $region69: #{_lambda_.3} parent=5 // pred_fallthru
        _
      %p452 = scmp.le.s32.totalorder 2, %s12
      // Predicated region
      $region90: #{_lambda_.3} parent=5 // pred_check
        %p453 = pneg %p452
      $region91: #{_lambda_.3} parent=5 // pred_check_branch
        %455 = sbr.rel (%p453) target = $region93
      $region92: #{_lambda_.3} parent=5 // pred_region
        %s456 = ssub.s32 %s12, 2
        // Predicated region
        $region94: #{_lambda_.3} parent=92 // pred_check
          %p457 = pneg %p150
        $region95: #{_lambda_.3} parent=92 // pred_check_branch
          %459 = sbr.rel (%p457) target = $region97
        $region96: #{_lambda_.3} parent=92 // pred_region
          %s460 = sand.u32 %s135, 1
          %s461 = scalar_lea.sflag [#allocation8], %s460
          %s462 = sand.u32 %s135, 1
          %s463 = smul.addr %s462, 8
          %s464 = scalar_lea.vmem [#allocation7], %s463
          %465 = dma.done %s461, 128
        $region97: #{_lambda_.3} parent=92 // pred_fallthru
          _
      $region93: #{_lambda_.3} parent=5 // pred_fallthru
        _
    $region6: #{_lambda_.3} parent=1 // loop_footer
      %s16 = sadd.s32 1, %s12
    $region7: #{_lambda_.3} parent=1 // loop_footer_branch
      %11 = sbr.rel target = $region3
    $region8: #{_lambda_.3} parent=1 // loop_exit
      _
    %466 = vsyncpa [#allocation8], 1
    %s467 = scalar_lea.sflag [#allocation8], 1
    %468 = vsyncpa %s467, 1

// kernel: _lambda_.2
$region0: #{_lambda_.2}
  #allocation0 [shape = 'u32[]', space=smem, size = 0x4, offset = 0x4, fixed_abs, tag = 'smem constant byte address 0x4 - core index']
  #allocation1 [shape = 'u32[144,128]{1,0:T(1,128)}', space=vmem, size = 0x12000, scoped, tag = 'internal scratch']
  #allocation2 [shape = 'f32[8,256]{1,0:T(8,128)}', space=vmem, size = 0x2000, scoped, tag = 'scratch operand']
  %s0 = inlined_call_operand.vmem [shape: f32[8,256], index: 0, kind: input, shape index: {}]
  %s1 = inlined_call_operand.vmem [shape: bf16[256,256], index: 1, kind: input, shape index: {}]
  %s2 = inlined_call_operand.vmem [shape: f32[1,128], index: 2, kind: input, shape index: {}]
  %s3 = inlined_call_operand.vmem [shape: bf16[128,128], index: 3, kind: input, shape index: {}]
  %s4 = inlined_call_operand.vmem [shape: f32[1,128], index: 4, kind: input, shape index: {}]
  %s5 = inlined_call_operand.vmem [shape: bf16[128,64], index: 5, kind: input, shape index: {}]
  %s6 = inlined_call_operand.vmem [shape: f32[1,64], index: 6, kind: input, shape index: {}]
  %s7 = inlined_call_operand.vmem [shape: bf16[32,32], index: 7, kind: input, shape index: {}]
  %s8 = inlined_call_operand.vmem [shape: f32[1,32], index: 8, kind: input, shape index: {}]
  %s9 = inlined_call_operand.vmem [shape: bf16[32,32], index: 9, kind: input, shape index: {}]
  %s10 = inlined_call_operand.vmem [shape: f32[1,32], index: 10, kind: input, shape index: {}]
  %s11 = inlined_call_operand.vmem [shape: bf16[32,32], index: 11, kind: input, shape index: {}]
  %s12 = inlined_call_operand.vmem [shape: f32[1,32], index: 12, kind: input, shape index: {}]
  %s13 = inlined_call_operand.vmem [shape: bf16[32,32], index: 13, kind: input, shape index: {}]
  %s14 = inlined_call_operand.vmem [shape: f32[1,32], index: 14, kind: input, shape index: {}]
  %s15 = inlined_call_operand.vmem [shape: f32[8,128], index: 15, kind: output, shape index: {}]
  %s16 = sld [smem:[#allocation0]]
  $region101: #{_lambda_.2} parent=0
    _
  %s18 = ssub.s32 1, %s16
  %s19 = scalar_select 0, %s18, %s16
  loop: start=0, step=1, limit=4
  $region2: #{_lambda_.2} parent=0 // loop_pre_header
    _
  $region3: #{_lambda_.2} parent=0 // loop_header
    %s21 = sphi 0, %s25
    %p22 = scmp.ge.s32.totalorder %s21, 4
    %s28 = sphi 0, %s40
    %s29 = sphi 0, %s36
    %s30 = sphi 0, %s28
    %s31 = sphi 0, %s29
    %s32 = sphi 0, %s30
    %s33 = sphi 0, %s31
    %s45 = sphi 0, %s47
    %s48 = sphi 0, %s45
    %s49 = sphi 0, %s48
    %s65 = sphi 0, %s49
    %s71 = sphi 0, %s73
    %s74 = sphi 0, %s71
    %s75 = sphi 0, %s74
    %s91 = sphi 0, %s75
    %s95 = sphi 0, %s95
    %s97 = sphi 0, %s95
    %s98 = sphi 0, %s97
    %s112 = sphi 0, %s98
    %s116 = sphi 0, %s116
    %s118 = sphi 0, %s116
    %s119 = sphi 0, %s118
    %s133 = sphi 0, %s119
    %s137 = sphi 0, %s137
    %s139 = sphi 0, %s137
    %s140 = sphi 0, %s139
    %s154 = sphi 0, %s140
    %s158 = sphi 0, %s158
    %s160 = sphi 0, %s158
    %s161 = sphi 0, %s160
    %s175 = sphi 0, %s161
    %s179 = sphi 0, %s179
    %s181 = sphi 0, %s179
    %s182 = sphi 0, %s181
    %s196 = sphi 0, %s182
    %s200 = sphi 0, %s200
    %s202 = sphi 0, %s200
    %s203 = sphi 0, %s202
    %s217 = sphi 0, %s203
    %s221 = sphi 0, %s221
    %s223 = sphi 0, %s221
    %s224 = sphi 0, %s223
    %s238 = sphi 0, %s224
    %s242 = sphi 0, %s242
    %s244 = sphi 0, %s242
    %s245 = sphi 0, %s244
    %s259 = sphi 0, %s245
    %s263 = sphi 0, %s263
    %s265 = sphi 0, %s263
    %s266 = sphi 0, %s265
    %s280 = sphi 0, %s266
    %s284 = sphi 0, %s284
    %s286 = sphi 0, %s284
    %s287 = sphi 0, %s286
    %s301 = sphi 0, %s287
    %s305 = sphi 0, %s305
    %s307 = sphi 0, %s305
    %s308 = sphi 0, %s307
    %s322 = sphi 0, %s308
    %s326 = sphi 0, %s326
    %s328 = sphi 0, %s326
    %s329 = sphi 0, %s328
    %s343 = sphi 0, %s329
    %s347 = sphi 0, %s347
    %s349 = sphi 0, %s347
    %s350 = sphi 0, %s349
    %s364 = sphi 0, %s350
    %s370 = sphi 0, %s372
    %s373 = sphi 0, %s370
    %s374 = sphi 0, %s373
    %s390 = sphi 0, %s374
  $region4: #{_lambda_.2} parent=0 // loop_header_branch
    %24 = sbr.rel (%p22) target = $region8
  $region5: #{_lambda_.2} parent=0 // loop_body
    %s26 = ssub.s32 %s21, 1
    %s27 = ssub.s32 %s21, 2
    %s34 = sadd.s32 1, %s29
    %p35 = scmp.ge.s32.totalorder %s34, 2
    %s36 = scalar_select %p35, 0, %s34
    %s37 = sadd.s32 1, %s28
    %s38 = scalar_select %p35, %s37, %s28
    %p39 = scmp.ge.s32.totalorder %s38, 1
    %s40 = scalar_select %p39, 0, %s38
    %s41 = ssub.s32 %s28, %s40
    %s42 = ssub.s32 %s29, %s36
    %s43 = sor.u32 %s41, %s42
    %p44 = scmp.eq.s32.totalorder %s43, 0
    %s46 = sadd.s32 %s45, 1
    %s47 = scalar_select %p44, %s45, %s46
    %p50 = pneg %p44
    %p51 = scmp.eq.s32.totalorder %s21, 1
    %p52 = por %p50, %p51
    %p53 = scmp.ne.s32.totalorder %s45, %s48
    %p54 = scmp.eq.s32.totalorder %s21, 0
    %p55 = por %p53, %p54
    %p56 = scmp.ne.s32.totalorder %s45, %s48
    %p57 = scmp.eq.s32.totalorder %s26, 1
    %p58 = por %p56, %p57
    %p59 = scmp.ne.s32.totalorder %s48, %s49
    %p60 = scmp.eq.s32.totalorder %s26, 0
    %p61 = por %p59, %p60
    %p62 = scmp.ne.s32.totalorder %s48, %s49
    %p63 = scmp.eq.s32.totalorder %s27, 1
    %p64 = por %p62, %p63
    %p66 = scmp.ne.s32.totalorder %s49, %s65
    %p67 = scmp.eq.s32.totalorder %s27, 0
    %p68 = por %p66, %p67
    %s69 = ssub.s32 %s29, %s36
    %p70 = scmp.eq.s32.totalorder %s69, 0
    %s72 = sadd.s32 %s71, 1
    %s73 = scalar_select %p70, %s71, %s72
    %p76 = pneg %p70
    %p77 = scmp.eq.s32.totalorder %s21, 1
    %p78 = por %p76, %p77
    %p79 = scmp.ne.s32.totalorder %s71, %s74
    %p80 = scmp.eq.s32.totalorder %s21, 0
    %p81 = por %p79, %p80
    %p82 = scmp.ne.s32.totalorder %s71, %s74
    %p83 = scmp.eq.s32.totalorder %s26, 1
    %p84 = por %p82, %p83
    %p85 = scmp.ne.s32.totalorder %s74, %s75
    %p86 = scmp.eq.s32.totalorder %s26, 0
    %p87 = por %p85, %p86
    %p88 = scmp.ne.s32.totalorder %s74, %s75
    %p89 = scmp.eq.s32.totalorder %s27, 1
    %p90 = por %p88, %p89
    %p92 = scmp.ne.s32.totalorder %s75, %s91
    %p93 = scmp.eq.s32.totalorder %s27, 0
    %p94 = por %p92, %p93
    %s96 = sadd.s32 %s95, 1
    %p99 = scmp.eq.s32.totalorder %s21, 1
    %p100 = scmp.ne.s32.totalorder %s95, %s97
    %p101 = scmp.eq.s32.totalorder %s21, 0
    %p102 = por %p100, %p101
    %p103 = scmp.ne.s32.totalorder %s95, %s97
    %p104 = scmp.eq.s32.totalorder %s26, 1
    %p105 = por %p103, %p104
    %p106 = scmp.ne.s32.totalorder %s97, %s98
    %p107 = scmp.eq.s32.totalorder %s26, 0
    %p108 = por %p106, %p107
    %p109 = scmp.ne.s32.totalorder %s97, %s98
    %p110 = scmp.eq.s32.totalorder %s27, 1
    %p111 = por %p109, %p110
    %p113 = scmp.ne.s32.totalorder %s98, %s112
    %p114 = scmp.eq.s32.totalorder %s27, 0
    %p115 = por %p113, %p114
    %s117 = sadd.s32 %s116, 1
    %p120 = scmp.eq.s32.totalorder %s21, 1
    %p121 = scmp.ne.s32.totalorder %s116, %s118
    %p122 = scmp.eq.s32.totalorder %s21, 0
    %p123 = por %p121, %p122
    %p124 = scmp.ne.s32.totalorder %s116, %s118
    %p125 = scmp.eq.s32.totalorder %s26, 1
    %p126 = por %p124, %p125
    %p127 = scmp.ne.s32.totalorder %s118, %s119
    %p128 = scmp.eq.s32.totalorder %s26, 0
    %p129 = por %p127, %p128
    %p130 = scmp.ne.s32.totalorder %s118, %s119
    %p131 = scmp.eq.s32.totalorder %s27, 1
    %p132 = por %p130, %p131
    %p134 = scmp.ne.s32.totalorder %s119, %s133
    %p135 = scmp.eq.s32.totalorder %s27, 0
    %p136 = por %p134, %p135
    %s138 = sadd.s32 %s137, 1
    %p141 = scmp.eq.s32.totalorder %s21, 1
    %p142 = scmp.ne.s32.totalorder %s137, %s139
    %p143 = scmp.eq.s32.totalorder %s21, 0
    %p144 = por %p142, %p143
    %p145 = scmp.ne.s32.totalorder %s137, %s139
    %p146 = scmp.eq.s32.totalorder %s26, 1
    %p147 = por %p145, %p146
    %p148 = scmp.ne.s32.totalorder %s139, %s140
    %p149 = scmp.eq.s32.totalorder %s26, 0
    %p150 = por %p148, %p149
    %p151 = scmp.ne.s32.totalorder %s139, %s140
    %p152 = scmp.eq.s32.totalorder %s27, 1
    %p153 = por %p151, %p152
    %p155 = scmp.ne.s32.totalorder %s140, %s154
    %p156 = scmp.eq.s32.totalorder %s27, 0
    %p157 = por %p155, %p156
    %s159 = sadd.s32 %s158, 1
    %p162 = scmp.eq.s32.totalorder %s21, 1
    %p163 = scmp.ne.s32.totalorder %s158, %s160
    %p164 = scmp.eq.s32.totalorder %s21, 0
    %p165 = por %p163, %p164
    %p166 = scmp.ne.s32.totalorder %s158, %s160
    %p167 = scmp.eq.s32.totalorder %s26, 1
    %p168 = por %p166, %p167
    %p169 = scmp.ne.s32.totalorder %s160, %s161
    %p170 = scmp.eq.s32.totalorder %s26, 0
    %p171 = por %p169, %p170
    %p172 = scmp.ne.s32.totalorder %s160, %s161
    %p173 = scmp.eq.s32.totalorder %s27, 1
    %p174 = por %p172, %p173
    %p176 = scmp.ne.s32.totalorder %s161, %s175
    %p177 = scmp.eq.s32.totalorder %s27, 0
    %p178 = por %p176, %p177
    %s180 = sadd.s32 %s179, 1
    %p183 = scmp.eq.s32.totalorder %s21, 1
    %p184 = scmp.ne.s32.totalorder %s179, %s181
    %p185 = scmp.eq.s32.totalorder %s21, 0
    %p186 = por %p184, %p185
    %p187 = scmp.ne.s32.totalorder %s179, %s181
    %p188 = scmp.eq.s32.totalorder %s26, 1
    %p189 = por %p187, %p188
    %p190 = scmp.ne.s32.totalorder %s181, %s182
    %p191 = scmp.eq.s32.totalorder %s26, 0
    %p192 = por %p190, %p191
    %p193 = scmp.ne.s32.totalorder %s181, %s182
    %p194 = scmp.eq.s32.totalorder %s27, 1
    %p195 = por %p193, %p194
    %p197 = scmp.ne.s32.totalorder %s182, %s196
    %p198 = scmp.eq.s32.totalorder %s27, 0
    %p199 = por %p197, %p198
    %s201 = sadd.s32 %s200, 1
    %p204 = scmp.eq.s32.totalorder %s21, 1
    %p205 = scmp.ne.s32.totalorder %s200, %s202
    %p206 = scmp.eq.s32.totalorder %s21, 0
    %p207 = por %p205, %p206
    %p208 = scmp.ne.s32.totalorder %s200, %s202
    %p209 = scmp.eq.s32.totalorder %s26, 1
    %p210 = por %p208, %p209
    %p211 = scmp.ne.s32.totalorder %s202, %s203
    %p212 = scmp.eq.s32.totalorder %s26, 0
    %p213 = por %p211, %p212
    %p214 = scmp.ne.s32.totalorder %s202, %s203
    %p215 = scmp.eq.s32.totalorder %s27, 1
    %p216 = por %p214, %p215
    %p218 = scmp.ne.s32.totalorder %s203, %s217
    %p219 = scmp.eq.s32.totalorder %s27, 0
    %p220 = por %p218, %p219
    %s222 = sadd.s32 %s221, 1
    %p225 = scmp.eq.s32.totalorder %s21, 1
    %p226 = scmp.ne.s32.totalorder %s221, %s223
    %p227 = scmp.eq.s32.totalorder %s21, 0
    %p228 = por %p226, %p227
    %p229 = scmp.ne.s32.totalorder %s221, %s223
    %p230 = scmp.eq.s32.totalorder %s26, 1
    %p231 = por %p229, %p230
    %p232 = scmp.ne.s32.totalorder %s223, %s224
    %p233 = scmp.eq.s32.totalorder %s26, 0
    %p234 = por %p232, %p233
    %p235 = scmp.ne.s32.totalorder %s223, %s224
    %p236 = scmp.eq.s32.totalorder %s27, 1
    %p237 = por %p235, %p236
    %p239 = scmp.ne.s32.totalorder %s224, %s238
    %p240 = scmp.eq.s32.totalorder %s27, 0
    %p241 = por %p239, %p240
    %s243 = sadd.s32 %s242, 1
    %p246 = scmp.eq.s32.totalorder %s21, 1
    %p247 = scmp.ne.s32.totalorder %s242, %s244
    %p248 = scmp.eq.s32.totalorder %s21, 0
    %p249 = por %p247, %p248
    %p250 = scmp.ne.s32.totalorder %s242, %s244
    %p251 = scmp.eq.s32.totalorder %s26, 1
    %p252 = por %p250, %p251
    %p253 = scmp.ne.s32.totalorder %s244, %s245
    %p254 = scmp.eq.s32.totalorder %s26, 0
    %p255 = por %p253, %p254
    %p256 = scmp.ne.s32.totalorder %s244, %s245
    %p257 = scmp.eq.s32.totalorder %s27, 1
    %p258 = por %p256, %p257
    %p260 = scmp.ne.s32.totalorder %s245, %s259
    %p261 = scmp.eq.s32.totalorder %s27, 0
    %p262 = por %p260, %p261
    %s264 = sadd.s32 %s263, 1
    %p267 = scmp.eq.s32.totalorder %s21, 1
    %p268 = scmp.ne.s32.totalorder %s263, %s265
    %p269 = scmp.eq.s32.totalorder %s21, 0
    %p270 = por %p268, %p269
    %p271 = scmp.ne.s32.totalorder %s263, %s265
    %p272 = scmp.eq.s32.totalorder %s26, 1
    %p273 = por %p271, %p272
    %p274 = scmp.ne.s32.totalorder %s265, %s266
    %p275 = scmp.eq.s32.totalorder %s26, 0
    %p276 = por %p274, %p275
    %p277 = scmp.ne.s32.totalorder %s265, %s266
    %p278 = scmp.eq.s32.totalorder %s27, 1
    %p279 = por %p277, %p278
    %p281 = scmp.ne.s32.totalorder %s266, %s280
    %p282 = scmp.eq.s32.totalorder %s27, 0
    %p283 = por %p281, %p282
    %s285 = sadd.s32 %s284, 1
    %p288 = scmp.eq.s32.totalorder %s21, 1
    %p289 = scmp.ne.s32.totalorder %s284, %s286
    %p290 = scmp.eq.s32.totalorder %s21, 0
    %p291 = por %p289, %p290
    %p292 = scmp.ne.s32.totalorder %s284, %s286
    %p293 = scmp.eq.s32.totalorder %s26, 1
    %p294 = por %p292, %p293
    %p295 = scmp.ne.s32.totalorder %s286, %s287
    %p296 = scmp.eq.s32.totalorder %s26, 0
    %p297 = por %p295, %p296
    %p298 = scmp.ne.s32.totalorder %s286, %s287
    %p299 = scmp.eq.s32.totalorder %s27, 1
    %p300 = por %p298, %p299
    %p302 = scmp.ne.s32.totalorder %s287, %s301
    %p303 = scmp.eq.s32.totalorder %s27, 0
    %p304 = por %p302, %p303
    %s306 = sadd.s32 %s305, 1
    %p309 = scmp.eq.s32.totalorder %s21, 1
    %p310 = scmp.ne.s32.totalorder %s305, %s307
    %p311 = scmp.eq.s32.totalorder %s21, 0
    %p312 = por %p310, %p311
    %p313 = scmp.ne.s32.totalorder %s305, %s307
    %p314 = scmp.eq.s32.totalorder %s26, 1
    %p315 = por %p313, %p314
    %p316 = scmp.ne.s32.totalorder %s307, %s308
    %p317 = scmp.eq.s32.totalorder %s26, 0
    %p318 = por %p316, %p317
    %p319 = scmp.ne.s32.totalorder %s307, %s308
    %p320 = scmp.eq.s32.totalorder %s27, 1
    %p321 = por %p319, %p320
    %p323 = scmp.ne.s32.totalorder %s308, %s322
    %p324 = scmp.eq.s32.totalorder %s27, 0
    %p325 = por %p323, %p324
    %s327 = sadd.s32 %s326, 1
    %p330 = scmp.eq.s32.totalorder %s21, 1
    %p331 = scmp.ne.s32.totalorder %s326, %s328
    %p332 = scmp.eq.s32.totalorder %s21, 0
    %p333 = por %p331, %p332
    %p334 = scmp.ne.s32.totalorder %s326, %s328
    %p335 = scmp.eq.s32.totalorder %s26, 1
    %p336 = por %p334, %p335
    %p337 = scmp.ne.s32.totalorder %s328, %s329
    %p338 = scmp.eq.s32.totalorder %s26, 0
    %p339 = por %p337, %p338
    %p340 = scmp.ne.s32.totalorder %s328, %s329
    %p341 = scmp.eq.s32.totalorder %s27, 1
    %p342 = por %p340, %p341
    %p344 = scmp.ne.s32.totalorder %s329, %s343
    %p345 = scmp.eq.s32.totalorder %s27, 0
    %p346 = por %p344, %p345
    %s348 = sadd.s32 %s347, 1
    %p351 = scmp.eq.s32.totalorder %s21, 1
    %p352 = scmp.ne.s32.totalorder %s347, %s349
    %p353 = scmp.eq.s32.totalorder %s21, 0
    %p354 = por %p352, %p353
    %p355 = scmp.ne.s32.totalorder %s347, %s349
    %p356 = scmp.eq.s32.totalorder %s26, 1
    %p357 = por %p355, %p356
    %p358 = scmp.ne.s32.totalorder %s349, %s350
    %p359 = scmp.eq.s32.totalorder %s26, 0
    %p360 = por %p358, %p359
    %p361 = scmp.ne.s32.totalorder %s349, %s350
    %p362 = scmp.eq.s32.totalorder %s27, 1
    %p363 = por %p361, %p362
    %p365 = scmp.ne.s32.totalorder %s350, %s364
    %p366 = scmp.eq.s32.totalorder %s27, 0
    %p367 = por %p365, %p366
    %s368 = ssub.s32 %s28, %s40
    %p369 = scmp.eq.s32.totalorder %s368, 0
    %s371 = sadd.s32 %s370, 1
    %s372 = scalar_select %p369, %s370, %s371
    %p375 = pneg %p369
    %p376 = scmp.eq.s32.totalorder %s21, 1
    %p377 = por %p375, %p376
    %p378 = scmp.ne.s32.totalorder %s370, %s373
    %p379 = scmp.eq.s32.totalorder %s21, 0
    %p380 = por %p378, %p379
    %p381 = scmp.ne.s32.totalorder %s370, %s373
    %p382 = scmp.eq.s32.totalorder %s26, 1
    %p383 = por %p381, %p382
    %p384 = scmp.ne.s32.totalorder %s373, %s374
    %p385 = scmp.eq.s32.totalorder %s26, 0
    %p386 = por %p384, %p385
    %p387 = scmp.ne.s32.totalorder %s373, %s374
    %p388 = scmp.eq.s32.totalorder %s27, 1
    %p389 = por %p387, %p388
    %p391 = scmp.ne.s32.totalorder %s374, %s390
    %p392 = scmp.eq.s32.totalorder %s27, 0
    %p393 = por %p391, %p392
    %p394 = scmp.le.s32.totalorder 1, %s21
    %p395 = scmp.lt.s32.totalorder %s21, 3
    %p396 = pnand %p394, %p395
    %p397 = pneg %p396
    // Predicated region
    $region9: #{_lambda_.2} parent=5 // pred_check
      _
    $region10: #{_lambda_.2} parent=5 // pred_check_branch
      %399 = sbr.rel (%p396) target = $region12
    $region11: #{_lambda_.2} parent=5 // pred_region
      %s400 = ssub.s32 %s21, 1
      // Predicated region
      $region13: #{_lambda_.2} parent=11 // pred_check
        %p401 = pneg %p108
      $region14: #{_lambda_.2} parent=11 // pred_check_branch
        %403 = sbr.rel (%p401) target = $region16
      $region15: #{_lambda_.2} parent=11 // pred_region
        _
      $region16: #{_lambda_.2} parent=11 // pred_fallthru
        _
      // Predicated region
      $region17: #{_lambda_.2} parent=11 // pred_check
        %p404 = pneg %p129
      $region18: #{_lambda_.2} parent=11 // pred_check_branch
        %406 = sbr.rel (%p404) target = $region20
      $region19: #{_lambda_.2} parent=11 // pred_region
        _
      $region20: #{_lambda_.2} parent=11 // pred_fallthru
        _
      // Predicated region
      $region21: #{_lambda_.2} parent=11 // pred_check
        %p407 = pneg %p150
      $region22: #{_lambda_.2} parent=11 // pred_check_branch
        %409 = sbr.rel (%p407) target = $region24
      $region23: #{_lambda_.2} parent=11 // pred_region
        _
      $region24: #{_lambda_.2} parent=11 // pred_fallthru
        _
      // Predicated region
      $region25: #{_lambda_.2} parent=11 // pred_check
        %p410 = pneg %p171
      $region26: #{_lambda_.2} parent=11 // pred_check_branch
        %412 = sbr.rel (%p410) target = $region28
      $region27: #{_lambda_.2} parent=11 // pred_region
        _
      $region28: #{_lambda_.2} parent=11 // pred_fallthru
        _
      // Predicated region
      $region29: #{_lambda_.2} parent=11 // pred_check
        %p413 = pneg %p192
      $region30: #{_lambda_.2} parent=11 // pred_check_branch
        %415 = sbr.rel (%p413) target = $region32
      $region31: #{_lambda_.2} parent=11 // pred_region
        _
      $region32: #{_lambda_.2} parent=11 // pred_fallthru
        _
      // Predicated region
      $region33: #{_lambda_.2} parent=11 // pred_check
        %p416 = pneg %p213
      $region34: #{_lambda_.2} parent=11 // pred_check_branch
        %418 = sbr.rel (%p416) target = $region36
      $region35: #{_lambda_.2} parent=11 // pred_region
        _
      $region36: #{_lambda_.2} parent=11 // pred_fallthru
        _
      // Predicated region
      $region37: #{_lambda_.2} parent=11 // pred_check
        %p419 = pneg %p234
      $region38: #{_lambda_.2} parent=11 // pred_check_branch
        %421 = sbr.rel (%p419) target = $region40
      $region39: #{_lambda_.2} parent=11 // pred_region
        _
      $region40: #{_lambda_.2} parent=11 // pred_fallthru
        _
      // Predicated region
      $region41: #{_lambda_.2} parent=11 // pred_check
        %p422 = pneg %p255
      $region42: #{_lambda_.2} parent=11 // pred_check_branch
        %424 = sbr.rel (%p422) target = $region44
      $region43: #{_lambda_.2} parent=11 // pred_region
        _
      $region44: #{_lambda_.2} parent=11 // pred_fallthru
        _
      // Predicated region
      $region45: #{_lambda_.2} parent=11 // pred_check
        %p425 = pneg %p276
      $region46: #{_lambda_.2} parent=11 // pred_check_branch
        %427 = sbr.rel (%p425) target = $region48
      $region47: #{_lambda_.2} parent=11 // pred_region
        _
      $region48: #{_lambda_.2} parent=11 // pred_fallthru
        _
      // Predicated region
      $region49: #{_lambda_.2} parent=11 // pred_check
        %p428 = pneg %p297
      $region50: #{_lambda_.2} parent=11 // pred_check_branch
        %430 = sbr.rel (%p428) target = $region52
      $region51: #{_lambda_.2} parent=11 // pred_region
        _
      $region52: #{_lambda_.2} parent=11 // pred_fallthru
        _
      // Predicated region
      $region53: #{_lambda_.2} parent=11 // pred_check
        %p431 = pneg %p318
      $region54: #{_lambda_.2} parent=11 // pred_check_branch
        %433 = sbr.rel (%p431) target = $region56
      $region55: #{_lambda_.2} parent=11 // pred_region
        _
      $region56: #{_lambda_.2} parent=11 // pred_fallthru
        _
      // Predicated region
      $region57: #{_lambda_.2} parent=11 // pred_check
        %p434 = pneg %p339
      $region58: #{_lambda_.2} parent=11 // pred_check_branch
        %436 = sbr.rel (%p434) target = $region60
      $region59: #{_lambda_.2} parent=11 // pred_region
        _
      $region60: #{_lambda_.2} parent=11 // pred_fallthru
        _
      // Predicated region
      $region61: #{_lambda_.2} parent=11 // pred_check
        %p437 = pneg %p360
      $region62: #{_lambda_.2} parent=11 // pred_check_branch
        %439 = sbr.rel (%p437) target = $region64
      $region63: #{_lambda_.2} parent=11 // pred_region
        _
      $region64: #{_lambda_.2} parent=11 // pred_fallthru
        _
    $region12: #{_lambda_.2} parent=5 // pred_fallthru
      _
    %p440 = scmp.lt.s32.totalorder %s21, 2
    // Predicated region
    $region65: #{_lambda_.2} parent=5 // pred_check
      %p441 = pneg %p440
    $region66: #{_lambda_.2} parent=5 // pred_check_branch
      %443 = sbr.rel (%p441) target = $region68
    $region67: #{_lambda_.2} parent=5 // pred_region
      // Predicated region
      $region69: #{_lambda_.2} parent=67 // pred_check
        %p444 = pneg %p55
      $region70: #{_lambda_.2} parent=67 // pred_check_branch
        %446 = sbr.rel (%p444) target = $region72
      $region71: #{_lambda_.2} parent=67 // pred_region
        %p447 = scmp.lt.s32.totalorder %s28, 0
        %s448 = scalar_select %p447, %s28, 0
        %p449 = scmp.lt.s32.totalorder %s29, 1
        %s450 = scalar_select %p449, %s29, 1
        %s451 = smul.addr %s448, 2
        %s452 = sadd.s32 %s450, %s451
        %s453 = smul.addr %s452, 8
        %s454 = scalar_lea.vmem %s0, %s453
      $region72: #{_lambda_.2} parent=67 // pred_fallthru
        _
      // Predicated region
      $region73: #{_lambda_.2} parent=67 // pred_check
        %p455 = pneg %p81
      $region74: #{_lambda_.2} parent=67 // pred_check_branch
        %457 = sbr.rel (%p455) target = $region76
      $region75: #{_lambda_.2} parent=67 // pred_region
        %s458 = smul.u32 16, %s29
        %p459 = scmp.lt.s32.totalorder %s458, 31
        %s460 = scalar_select %p459, %s458, 31
        %s461 = smul.addr %s460, 2
        %s462 = smul.addr %s461, 4
        %s463 = scalar_lea.vmem %s1, %s462
        %s464 = smul.u32 16, %s29
      $region76: #{_lambda_.2} parent=67 // pred_fallthru
        _
    $region68: #{_lambda_.2} parent=5 // pred_fallthru
      _
    %p465 = scmp.le.s32.totalorder 1, %s21
    %p466 = scmp.lt.s32.totalorder %s21, 3
    %p467 = pnand %p465, %p466
    %p468 = pneg %p467
    // Predicated region
    $region77: #{_lambda_.2} parent=5 // pred_check
      _
    $region78: #{_lambda_.2} parent=5 // pred_check_branch
      %470 = sbr.rel (%p467) target = $region80
    $region79: #{_lambda_.2} parent=5 // pred_region
      %s471 = ssub.s32 %s21, 1
      %p472 = scmp.lt.s32.totalorder %s30, 0
      %s473 = scalar_select %p472, %s30, 0
      %p474 = scmp.lt.s32.totalorder %s31, 1
      %s475 = scalar_select %p474, %s31, 1
      %s476 = smul.addr %s473, 2
      %s477 = sadd.s32 %s475, %s476
      %s478 = smul.addr %s477, 8
      %s479 = scalar_lea.vmem %s0, %s478
      %p480 = pneg %p61
      %p481 = pneg %p58
      %s482 = smul.u32 16, %s31
      %p483 = scmp.lt.s32.totalorder %s482, 31
      %s484 = scalar_select %p483, %s482, 31
      %s485 = smul.addr %s484, 2
      %s486 = smul.addr %s485, 4
      %s487 = scalar_lea.vmem %s1, %s486
      %p488 = pneg %p87
      %p489 = pneg %p84
      %p490 = pneg %p108
      %p491 = pneg %p105
      %p492 = pneg %p129
      %p493 = pneg %p126
      %p494 = pneg %p150
      %p495 = pneg %p147
      %p496 = pneg %p171
      %p497 = pneg %p168
      %p498 = pneg %p192
      %p499 = pneg %p189
      %p500 = pneg %p213
      %p501 = pneg %p210
      %p502 = pneg %p234
      %p503 = pneg %p231
      %p504 = pneg %p255
      %p505 = pneg %p252
      %p506 = pneg %p276
      %p507 = pneg %p273
      %p508 = pneg %p297
      %p509 = pneg %p294
      %p510 = pneg %p318
      %p511 = pneg %p315
      %p512 = pneg %p339
      %p513 = pneg %p336
      %p514 = pneg %p360
      %p515 = pneg %p357
      %p516 = pneg %p386
      %p517 = pneg %p383
      %p518 = scmp.lt.s32.totalorder %s30, 0
      %s519 = scalar_select %p518, %s30, 0
      %s520 = smul.addr %s519, 8
      %s521 = scalar_lea.vmem %s15, %s520
      %p522 = scmp.lt.s32.totalorder %s30, 0
      %s523 = scalar_select %p522, %s30, 0
      %p524 = scmp.lt.s32.totalorder %s31, 1
      %s525 = scalar_select %p524, %s31, 1
      %s526 = smul.addr %s523, 2
      %s527 = sadd.s32 %s525, %s526
      %s528 = smul.addr %s527, 8
      %s529 = scalar_lea.vmem %s0, %s528
      %s530 = smul.u32 16, %s31
      %p531 = scmp.lt.s32.totalorder %s530, 31
      %s532 = scalar_select %p531, %s530, 31
      %s533 = smul.addr %s532, 2
      %s534 = smul.addr %s533, 4
      %s535 = scalar_lea.vmem %s1, %s534
      %s536 = smul.u32 16, %s31
      %p537 = scmp.lt.s32.totalorder %s30, 0
      %s538 = scalar_select %p537, %s30, 0
      %s539 = smul.addr %s538, 8
      %s540 = scalar_lea.vmem %s15, %s539
      %p542 = scmp.eq.s32.totalorder %s31, 0
      // Predicated region
      $region81: #{_lambda_.2} parent=79 // pred_check
        %p543 = pneg %p542
      $region82: #{_lambda_.2} parent=79 // pred_check_branch
        %545 = sbr.rel (%p543) target = $region84
      $region83: #{_lambda_.2} parent=79 // pred_region
        %546 = vst [vmem:[#allocation2] sm:$0xff] 0.0
        %547 = vst [vmem:[#allocation2 + $0x8] sm:$0xff] 0.0
      $region84: #{_lambda_.2} parent=79 // pred_fallthru
        _
      %v548 = vld [vmem:[#allocation2] sm:$0xff]
      %v549 = vld [vmem:[#allocation2 + $0x8] sm:$0xff]
      %v550 = vld [vmem:[%s529] sm:$0xff]
      %v551 = vpack.c.bf16 %v550, %v550
      %v552 = vld [vmem:[%s535] sm:$0xff]
      %v553 = vld [vmem:[%s535 + $0x8] sm:$0xff]
      %v554 = vld [vmem:[%s535 + $0x10] sm:$0xff]
      %v555 = vld [vmem:[%s535 + $0x18] sm:$0xff]
      %v556 = vld [vmem:[%s535 + $0x20] sm:$0xff]
      %v557 = vld [vmem:[%s535 + $0x28] sm:$0xff]
      %v558 = vld [vmem:[%s535 + $0x30] sm:$0xff]
      %v559 = vld [vmem:[%s535 + $0x38] sm:$0xff]
      %v560 = vld [vmem:[%s535 + $0x40] sm:$0xff]
      %v561 = vld [vmem:[%s535 + $0x48] sm:$0xff]
      %v562 = vld [vmem:[%s535 + $0x50] sm:$0xff]
      %v563 = vld [vmem:[%s535 + $0x58] sm:$0xff]
      %v564 = vld [vmem:[%s535 + $0x60] sm:$0xff]
      %v565 = vld [vmem:[%s535 + $0x68] sm:$0xff]
      %v566 = vld [vmem:[%s535 + $0x70] sm:$0xff]
      %v567 = vld [vmem:[%s535 + $0x78] sm:$0xff]
      %v584 = vunpack.c.l.b16 %v552
      %v585 = vunpack.c.h.b16 %v552
      %v586 = vunpack.c.l.b16 %v553
      %v587 = vunpack.c.h.b16 %v553
      %v588 = vunpack.c.l.b16 %v554
      %v589 = vunpack.c.h.b16 %v554
      %v590 = vunpack.c.l.b16 %v555
      %v591 = vunpack.c.h.b16 %v555
      %v592 = vunpack.c.l.b16 %v556
      %v593 = vunpack.c.h.b16 %v556
      %v594 = vunpack.c.l.b16 %v557
      %v595 = vunpack.c.h.b16 %v557
      %v596 = vunpack.c.l.b16 %v558
      %v597 = vunpack.c.h.b16 %v558
      %v598 = vunpack.c.l.b16 %v559
      %v599 = vunpack.c.h.b16 %v559
      %v600 = vunpack.c.l.b16 %v560
      %v601 = vunpack.c.h.b16 %v560
      %v602 = vunpack.c.l.b16 %v561
      %v603 = vunpack.c.h.b16 %v561
      %v604 = vunpack.c.l.b16 %v562
      %v605 = vunpack.c.h.b16 %v562
      %v606 = vunpack.c.l.b16 %v563
      %v607 = vunpack.c.h.b16 %v563
      %v608 = vunpack.c.l.b16 %v564
      %v609 = vunpack.c.h.b16 %v564
      %v610 = vunpack.c.l.b16 %v565
      %v611 = vunpack.c.h.b16 %v565
      %v612 = vunpack.c.l.b16 %v566
      %v613 = vunpack.c.h.b16 %v566
      %v614 = vunpack.c.l.b16 %v567
      %v615 = vunpack.c.h.b16 %v567
      %v616 = vpack.c.b16 %v586, %v584
      %v617 = vpack.c.b16 %v587, %v585
      %v618 = vpack.c.b16 %v590, %v588
      %v619 = vpack.c.b16 %v591, %v589
      %v620 = vpack.c.b16 %v594, %v592
      %v621 = vpack.c.b16 %v595, %v593
      %v622 = vpack.c.b16 %v598, %v596
      %v623 = vpack.c.b16 %v599, %v597
      %v624 = vpack.c.b16 %v602, %v600
      %v625 = vpack.c.b16 %v603, %v601
      %v626 = vpack.c.b16 %v606, %v604
      %v627 = vpack.c.b16 %v607, %v605
      %v628 = vpack.c.b16 %v610, %v608
      %v629 = vpack.c.b16 %v611, %v609
      %v630 = vpack.c.b16 %v614, %v612
      %v631 = vpack.c.b16 %v615, %v613
      %648 = vmatprep.subr.bf16.mxu0 %v617
      %649 = vmatpush1.bf16.msra.mxu0 %v616
      %650 = vmatprep.subr.bf16.mxu0 %v619
      %651 = vmatpush1.bf16.msra.mxu0 %v618
      %652 = vmatprep.subr.bf16.mxu0 %v621
      %653 = vmatpush1.bf16.msra.mxu0 %v620
      %654 = vmatprep.subr.bf16.mxu0 %v623
      %655 = vmatpush1.bf16.msra.mxu0 %v622
      %656 = vmatprep.subr.bf16.mxu0 %v625
      %657 = vmatpush1.bf16.msra.mxu0 %v624
      %658 = vmatprep.subr.bf16.mxu0 %v627
      %659 = vmatpush1.bf16.msra.mxu0 %v626
      %660 = vmatprep.subr.bf16.mxu0 %v629
      %661 = vmatpush1.bf16.msra.mxu0 %v628
      %662 = vmatprep.subr.bf16.mxu0 %v631
      %663 = vmatpush1.bf16.msra.mxu0 %v630
      %664 = vmatprep.subr.bf16.mxu0 0
      %665 = vmatpush1.bf16.msra.mxu0 0
      %666 = vmatprep.subr.bf16.mxu0 0
      %667 = vmatpush1.bf16.msra.mxu0 0
      %668 = vmatprep.subr.bf16.mxu0 0
      %669 = vmatpush1.bf16.msra.mxu0 0
      %670 = vmatprep.subr.bf16.mxu0 0
      %671 = vmatpush1.bf16.msra.mxu0 0
      %672 = vmatprep.subr.bf16.mxu0 0
      %673 = vmatpush1.bf16.msra.mxu0 0
      %674 = vmatprep.subr.bf16.mxu0 0
      %675 = vmatpush1.bf16.msra.mxu0 0
      %676 = vmatprep.subr.bf16.mxu0 0
      %677 = vmatpush1.bf16.msra.mxu0 0
      %678 = vmatprep.subr.bf16.mxu0 0
      %679 = vmatpush1.bf16.msra.mxu0 0
      %680 = vmatprep.mubr.bf16.mxu0 0
      %681 = vmatmul.mubr.bf16.gmra.mrb[0].mxu0 %v551
      %v682 = vpop.f32.mrb[0].mxu0
      %v683 = vadd.f32 0.0, %v682
      %v684 = vpop.f32.mrb[0].mxu0
      %v685 = vadd.f32 0.0, %v684
      %v686 = vpop.f32.mrb[0].mxu0
      %v687 = vpop.f32.mrb[0].mxu0
      %688 = vdwg.mxu0
      %v689 = vadd.f32 %v548, %v683
      %v690 = vadd.f32 %v549, %v685
      %691 = vst [vmem:[#allocation2] sm:$0xff] %v689
      %692 = vst [vmem:[#allocation2 + $0x8] sm:$0xff] %v690
      %p693 = scmp.eq.s32.totalorder %s31, 1
      // Predicated region
      $region85: #{_lambda_.2} parent=79 // pred_check
        %p694 = pneg %p693
      $region86: #{_lambda_.2} parent=79 // pred_check_branch
        %696 = sbr.rel (%p694) target = $region88
      $region87: #{_lambda_.2} parent=79 // pred_region
        %v697 = vld [vmem:[#allocation2] sm:$0xff]
        %v698 = vld [vmem:[#allocation2 + $0x8] sm:$0xff]
        %v699 = vld [vmem:[%s2] sm:$0x1]
        %v701 = vlaneseq
        %v702 = vshrl.u32 %v701, 7
        %v703 = vsub.s32 0, %v702
        %v704 = vrot.slane %v699, %v703
        %v706 = vadd.f32 %v697, %v704
        %v707 = vmax.f32 %v706, 0.0
        %v708 = vpack.c.bf16 %v707, %v707
        %v709 = vld [vmem:[%s3] sm:$0xf]
        %v710 = vld [vmem:[%s3 + $0x4] sm:$0xf]
        %v711 = vld [vmem:[%s3 + $0x8] sm:$0xf]
        %v712 = vld [vmem:[%s3 + $0xc] sm:$0xf]
        %v713 = vld [vmem:[%s3 + $0x10] sm:$0xf]
        %v714 = vld [vmem:[%s3 + $0x14] sm:$0xf]
        %v715 = vld [vmem:[%s3 + $0x18] sm:$0xf]
        %v716 = vld [vmem:[%s3 + $0x1c] sm:$0xf]
        %v717 = vld [vmem:[%s3 + $0x20] sm:$0xf]
        %v718 = vld [vmem:[%s3 + $0x24] sm:$0xf]
        %v719 = vld [vmem:[%s3 + $0x28] sm:$0xf]
        %v720 = vld [vmem:[%s3 + $0x2c] sm:$0xf]
        %v721 = vld [vmem:[%s3 + $0x30] sm:$0xf]
        %v722 = vld [vmem:[%s3 + $0x34] sm:$0xf]
        %v723 = vld [vmem:[%s3 + $0x38] sm:$0xf]
        %v724 = vld [vmem:[%s3 + $0x3c] sm:$0xf]
        %v725 = vld [vmem:[%s4] sm:$0x1]
        %v727 = vlaneseq
        %v728 = vshrl.u32 %v727, 7
        %v729 = vsub.s32 0, %v728
        %v730 = vrot.slane %v725, %v729
        %v748 = vunpack.c.l.b16 %v709
        %v749 = vunpack.c.l.b16 %v710
        %v750 = vunpack.c.l.b16 %v711
        %v751 = vunpack.c.l.b16 %v712
        %v752 = vunpack.c.l.b16 %v713
        %v753 = vunpack.c.l.b16 %v714
        %v754 = vunpack.c.l.b16 %v715
        %v755 = vunpack.c.l.b16 %v716
        %v756 = vunpack.c.l.b16 %v717
        %v757 = vunpack.c.l.b16 %v718
        %v758 = vunpack.c.l.b16 %v719
        %v759 = vunpack.c.l.b16 %v720
        %v760 = vunpack.c.l.b16 %v721
        %v761 = vunpack.c.l.b16 %v722
        %v762 = vunpack.c.l.b16 %v723
        %v763 = vunpack.c.l.b16 %v724
        %v764 = vpack.c.b16 %v749, %v748
        %v765 = vpack.c.b16 %v751, %v750
        %v766 = vpack.c.b16 %v753, %v752
        %v767 = vpack.c.b16 %v755, %v754
        %v768 = vpack.c.b16 %v757, %v756
        %v769 = vpack.c.b16 %v759, %v758
        %v770 = vpack.c.b16 %v761, %v760
        %v771 = vpack.c.b16 %v763, %v762
        %780 = vmatprep.subr.bf16.mxu0 0
        %781 = vmatpush1.bf16.msra.mxu0 %v764
        %782 = vmatprep.subr.bf16.mxu0 0
        %783 = vmatpush1.bf16.msra.mxu0 %v765
        %784 = vmatprep.subr.bf16.mxu0 0
        %785 = vmatpush1.bf16.msra.mxu0 %v766
        %786 = vmatprep.subr.bf16.mxu0 0
        %787 = vmatpush1.bf16.msra.mxu0 %v767
        %788 = vmatprep.subr.bf16.mxu0 0
        %789 = vmatpush1.bf16.msra.mxu0 %v768
        %790 = vmatprep.subr.bf16.mxu0 0
        %791 = vmatpush1.bf16.msra.mxu0 %v769
        %792 = vmatprep.subr.bf16.mxu0 0
        %793 = vmatpush1.bf16.msra.mxu0 %v770
        %794 = vmatprep.subr.bf16.mxu0 0
        %795 = vmatpush1.bf16.msra.mxu0 %v771
        %796 = vmatprep.subr.bf16.mxu0 0
        %797 = vmatpush1.bf16.msra.mxu0 0
        %798 = vmatprep.subr.bf16.mxu0 0
        %799 = vmatpush1.bf16.msra.mxu0 0
        %800 = vmatprep.subr.bf16.mxu0 0
        %801 = vmatpush1.bf16.msra.mxu0 0
        %802 = vmatprep.subr.bf16.mxu0 0
        %803 = vmatpush1.bf16.msra.mxu0 0
        %804 = vmatprep.subr.bf16.mxu0 0
        %805 = vmatpush1.bf16.msra.mxu0 0
        %806 = vmatprep.subr.bf16.mxu0 0
        %807 = vmatpush1.bf16.msra.mxu0 0
        %808 = vmatprep.subr.bf16.mxu0 0
        %809 = vmatpush1.bf16.msra.mxu0 0
        %810 = vmatprep.subr.bf16.mxu0 0
        %811 = vmatpush1.bf16.msra.mxu0 0
        %812 = vmatprep.mubr.bf16.mxu0 0
        %813 = vmatmul.mubr.bf16.gmra.mrb[0].mxu0 %v708
        %v814 = vpop.f32.mrb[0].mxu0
        %v815 = vadd.f32 %v730, %v814
        %v816 = vpop.f32.mrb[0].mxu0
        %v817 = vpop.f32.mrb[0].mxu0
        %v818 = vpop.f32.mrb[0].mxu0
        %819 = vdwg.mxu0
        %v820 = vmax.f32 %v815, 0.0
        %v821 = vadd.f32 %v820, %v698
        %v822 = vpack.c.bf16 %v821, %v821
        %v823 = vld [vmem:[%s5] sm:$0xf]
        %v824 = vld [vmem:[%s5 + $0x4] sm:$0xf]
        %v825 = vld [vmem:[%s5 + $0x8] sm:$0xf]
        %v826 = vld [vmem:[%s5 + $0xc] sm:$0xf]
        %v827 = vld [vmem:[%s5 + $0x10] sm:$0xf]
        %v828 = vld [vmem:[%s5 + $0x14] sm:$0xf]
        %v829 = vld [vmem:[%s5 + $0x18] sm:$0xf]
        %v830 = vld [vmem:[%s5 + $0x1c] sm:$0xf]
        %v831 = vld [vmem:[%s5 + $0x20] sm:$0xf]
        %v832 = vld [vmem:[%s5 + $0x24] sm:$0xf]
        %v833 = vld [vmem:[%s5 + $0x28] sm:$0xf]
        %v834 = vld [vmem:[%s5 + $0x2c] sm:$0xf]
        %v835 = vld [vmem:[%s5 + $0x30] sm:$0xf]
        %v836 = vld [vmem:[%s5 + $0x34] sm:$0xf]
        %v837 = vld [vmem:[%s5 + $0x38] sm:$0xf]
        %v838 = vld [vmem:[%s5 + $0x3c] sm:$0xf]
        %v839 = vld [vmem:[%s6] sm:$0x1]
        %v841 = vlaneseq
        %v842 = vshrl.u32 %v841, 7
        %v843 = vsub.s32 0, %v842
        %v844 = vrot.slane %v839, %v843
        %v862 = vunpack.c.l.b16 %v823
        %v863 = vunpack.c.l.b16 %v824
        %v864 = vunpack.c.l.b16 %v825
        %v865 = vunpack.c.l.b16 %v826
        %v866 = vunpack.c.l.b16 %v827
        %v867 = vunpack.c.l.b16 %v828
        %v868 = vunpack.c.l.b16 %v829
        %v869 = vunpack.c.l.b16 %v830
        %v870 = vunpack.c.l.b16 %v831
        %v871 = vunpack.c.l.b16 %v832
        %v872 = vunpack.c.l.b16 %v833
        %v873 = vunpack.c.l.b16 %v834
        %v874 = vunpack.c.l.b16 %v835
        %v875 = vunpack.c.l.b16 %v836
        %v876 = vunpack.c.l.b16 %v837
        %v877 = vunpack.c.l.b16 %v838
        %v878 = vpack.c.b16 %v863, %v862
        %v879 = vpack.c.b16 %v865, %v864
        %v880 = vpack.c.b16 %v867, %v866
        %v881 = vpack.c.b16 %v869, %v868
        %v882 = vpack.c.b16 %v871, %v870
        %v883 = vpack.c.b16 %v873, %v872
        %v884 = vpack.c.b16 %v875, %v874
        %v885 = vpack.c.b16 %v877, %v876
        %894 = vmatprep.subr.bf16.mxu0 0
        %895 = vmatpush1.bf16.msra.mxu0 %v878
        %896 = vmatprep.subr.bf16.mxu0 0
        %897 = vmatpush1.bf16.msra.mxu0 %v879
        %898 = vmatprep.subr.bf16.mxu0 0
        %899 = vmatpush1.bf16.msra.mxu0 %v880
        %900 = vmatprep.subr.bf16.mxu0 0
        %901 = vmatpush1.bf16.msra.mxu0 %v881
        %902 = vmatprep.subr.bf16.mxu0 0
        %903 = vmatpush1.bf16.msra.mxu0 %v882
        %904 = vmatprep.subr.bf16.mxu0 0
        %905 = vmatpush1.bf16.msra.mxu0 %v883
        %906 = vmatprep.subr.bf16.mxu0 0
        %907 = vmatpush1.bf16.msra.mxu0 %v884
        %908 = vmatprep.subr.bf16.mxu0 0
        %909 = vmatpush1.bf16.msra.mxu0 %v885
        %910 = vmatprep.subr.bf16.mxu0 0
        %911 = vmatpush1.bf16.msra.mxu0 0
        %912 = vmatprep.subr.bf16.mxu0 0
        %913 = vmatpush1.bf16.msra.mxu0 0
        %914 = vmatprep.subr.bf16.mxu0 0
        %915 = vmatpush1.bf16.msra.mxu0 0
        %916 = vmatprep.subr.bf16.mxu0 0
        %917 = vmatpush1.bf16.msra.mxu0 0
        %918 = vmatprep.subr.bf16.mxu0 0
        %919 = vmatpush1.bf16.msra.mxu0 0
        %920 = vmatprep.subr.bf16.mxu0 0
        %921 = vmatpush1.bf16.msra.mxu0 0
        %922 = vmatprep.subr.bf16.mxu0 0
        %923 = vmatpush1.bf16.msra.mxu0 0
        %924 = vmatprep.subr.bf16.mxu0 0
        %925 = vmatpush1.bf16.msra.mxu0 0
        %926 = vmatprep.mubr.bf16.mxu0 0
        %927 = vmatmul.mubr.bf16.gmra.mrb[0].mxu0 %v822
        %v928 = vpop.f32.mrb[0].mxu0
        %v929 = vadd.f32 %v844, %v928
        %v930 = vpop.f32.mrb[0].mxu0
        %v931 = vpop.f32.mrb[0].mxu0
        %v932 = vpop.f32.mrb[0].mxu0
        %933 = vdwg.mxu0
        %v934 = vpack.c.bf16 %v929, %v929
        %v935 = vld [vmem:[%s7] sm:$0xf]
        %v936 = vld [vmem:[%s7 + $0x4] sm:$0xf]
        %v937 = vld [vmem:[%s7 + $0x8] sm:$0xf]
        %v938 = vld [vmem:[%s7 + $0xc] sm:$0xf]
        %v939 = vld [vmem:[%s8] sm:$0x1]
        %v941 = vlaneseq
        %v942 = vshrl.u32 %v941, 7
        %v943 = vsub.s32 0, %v942
        %v944 = vrot.slane %v939, %v943
        %v950 = vunpack.c.l.b16 %v935
        %v951 = vunpack.c.l.b16 %v936
        %v952 = vunpack.c.l.b16 %v937
        %v953 = vunpack.c.l.b16 %v938
        %v954 = vpack.c.b16 %v951, %v950
        %v955 = vpack.c.b16 %v953, %v952
        %vm958 = vcmask 261120
        %v960 = vsel %vm958, %v934, 0
        %962 = vmatprep.subr.bf16.mxu0 0
        %963 = vmatpush1.bf16.msra.mxu0 %v954
        %964 = vmatprep.subr.bf16.mxu0 0
        %965 = vmatpush1.bf16.msra.mxu0 %v955
        %966 = vmatprep.subr.bf16.mxu0 0
        %967 = vmatpush1.bf16.msra.mxu0 0
        %968 = vmatprep.subr.bf16.mxu0 0
        %969 = vmatpush1.bf16.msra.mxu0 0
        %970 = vmatprep.subr.bf16.mxu0 0
        %971 = vmatpush1.bf16.msra.mxu0 0
        %972 = vmatprep.subr.bf16.mxu0 0
        %973 = vmatpush1.bf16.msra.mxu0 0
        %974 = vmatprep.subr.bf16.mxu0 0
        %975 = vmatpush1.bf16.msra.mxu0 0
        %976 = vmatprep.subr.bf16.mxu0 0
        %977 = vmatpush1.bf16.msra.mxu0 0
        %978 = vmatprep.subr.bf16.mxu0 0
        %979 = vmatpush1.bf16.msra.mxu0 0
        %980 = vmatprep.subr.bf16.mxu0 0
        %981 = vmatpush1.bf16.msra.mxu0 0
        %982 = vmatprep.subr.bf16.mxu0 0
        %983 = vmatpush1.bf16.msra.mxu0 0
        %984 = vmatprep.subr.bf16.mxu0 0
        %985 = vmatpush1.bf16.msra.mxu0 0
        %986 = vmatprep.subr.bf16.mxu0 0
        %987 = vmatpush1.bf16.msra.mxu0 0
        %988 = vmatprep.subr.bf16.mxu0 0
        %989 = vmatpush1.bf16.msra.mxu0 0
        %990 = vmatprep.subr.bf16.mxu0 0
        %991 = vmatpush1.bf16.msra.mxu0 0
        %992 = vmatprep.subr.bf16.mxu0 0
        %993 = vmatpush1.bf16.msra.mxu0 0
        %994 = vmatprep.mubr.bf16.mxu0 0
        %995 = vmatmul.mubr.bf16.gmra.mrb[0].mxu0 %v960
        %v996 = vpop.f32.mrb[0].mxu0
        %v997 = vadd.f32 %v944, %v996
        %v998 = vpop.f32.mrb[0].mxu0
        %v999 = vpop.f32.mrb[0].mxu0
        %v1000 = vpop.f32.mrb[0].mxu0
        %1001 = vdwg.mxu0
        %v1002 = vtanh.pop %v997
        %v1003 = vpack.c.bf16 %v1002, %v1002
        %v1004 = vld [vmem:[%s9] sm:$0xf]
        %v1005 = vld [vmem:[%s9 + $0x4] sm:$0xf]
        %v1006 = vld [vmem:[%s9 + $0x8] sm:$0xf]
        %v1007 = vld [vmem:[%s9 + $0xc] sm:$0xf]
        %v1008 = vld [vmem:[%s10] sm:$0x1]
        %v1010 = vlaneseq
        %v1011 = vshrl.u32 %v1010, 7
        %v1012 = vsub.s32 0, %v1011
        %v1013 = vrot.slane %v1008, %v1012
        %v1019 = vunpack.c.l.b16 %v1004
        %v1020 = vunpack.c.l.b16 %v1005
        %v1021 = vunpack.c.l.b16 %v1006
        %v1022 = vunpack.c.l.b16 %v1007
        %v1023 = vpack.c.b16 %v1020, %v1019
        %v1024 = vpack.c.b16 %v1022, %v1021
        %v1028 = vsel %vm958, %v1003, 0
        %1030 = vmatprep.subr.bf16.mxu0 0
        %1031 = vmatpush1.bf16.msra.mxu0 %v1023
        %1032 = vmatprep.subr.bf16.mxu0 0
        %1033 = vmatpush1.bf16.msra.mxu0 %v1024
        %1034 = vmatprep.subr.bf16.mxu0 0
        %1035 = vmatpush1.bf16.msra.mxu0 0
        %1036 = vmatprep.subr.bf16.mxu0 0
        %1037 = vmatpush1.bf16.msra.mxu0 0
        %1038 = vmatprep.subr.bf16.mxu0 0
        %1039 = vmatpush1.bf16.msra.mxu0 0
        %1040 = vmatprep.subr.bf16.mxu0 0
        %1041 = vmatpush1.bf16.msra.mxu0 0
        %1042 = vmatprep.subr.bf16.mxu0 0
        %1043 = vmatpush1.bf16.msra.mxu0 0
        %1044 = vmatprep.subr.bf16.mxu0 0
        %1045 = vmatpush1.bf16.msra.mxu0 0
        %1046 = vmatprep.subr.bf16.mxu0 0
        %1047 = vmatpush1.bf16.msra.mxu0 0
        %1048 = vmatprep.subr.bf16.mxu0 0
        %1049 = vmatpush1.bf16.msra.mxu0 0
        %1050 = vmatprep.subr.bf16.mxu0 0
        %1051 = vmatpush1.bf16.msra.mxu0 0
        %1052 = vmatprep.subr.bf16.mxu0 0
        %1053 = vmatpush1.bf16.msra.mxu0 0
        %1054 = vmatprep.subr.bf16.mxu0 0
        %1055 = vmatpush1.bf16.msra.mxu0 0
        %1056 = vmatprep.subr.bf16.mxu0 0
        %1057 = vmatpush1.bf16.msra.mxu0 0
        %1058 = vmatprep.subr.bf16.mxu0 0
        %1059 = vmatpush1.bf16.msra.mxu0 0
        %1060 = vmatprep.subr.bf16.mxu0 0
        %1061 = vmatpush1.bf16.msra.mxu0 0
        %1062 = vmatprep.mubr.bf16.mxu0 0
        %1063 = vmatmul.mubr.bf16.gmra.mrb[0].mxu0 %v1028
        %v1064 = vpop.f32.mrb[0].mxu0
        %v1065 = vadd.f32 %v1013, %v1064
        %v1066 = vpop.f32.mrb[0].mxu0
        %v1067 = vpop.f32.mrb[0].mxu0
        %v1068 = vpop.f32.mrb[0].mxu0
        %1069 = vdwg.mxu0
        %v1070 = vtanh.pop %v1065
        %v1071 = vpack.c.bf16 %v1070, %v1070
        %v1072 = vld [vmem:[%s11] sm:$0xf]
        %v1073 = vld [vmem:[%s11 + $0x4] sm:$0xf]
        %v1074 = vld [vmem:[%s11 + $0x8] sm:$0xf]
        %v1075 = vld [vmem:[%s11 + $0xc] sm:$0xf]
        %v1076 = vld [vmem:[%s12] sm:$0x1]
        %v1078 = vlaneseq
        %v1079 = vshrl.u32 %v1078, 7
        %v1080 = vsub.s32 0, %v1079
        %v1081 = vrot.slane %v1076, %v1080
        %v1087 = vunpack.c.l.b16 %v1072
        %v1088 = vunpack.c.l.b16 %v1073
        %v1089 = vunpack.c.l.b16 %v1074
        %v1090 = vunpack.c.l.b16 %v1075
        %v1091 = vpack.c.b16 %v1088, %v1087
        %v1092 = vpack.c.b16 %v1090, %v1089
        %v1096 = vsel %vm958, %v1071, 0
        %1098 = vmatprep.subr.bf16.mxu0 0
        %1099 = vmatpush1.bf16.msra.mxu0 %v1091
        %1100 = vmatprep.subr.bf16.mxu0 0
        %1101 = vmatpush1.bf16.msra.mxu0 %v1092
        %1102 = vmatprep.subr.bf16.mxu0 0
        %1103 = vmatpush1.bf16.msra.mxu0 0
        %1104 = vmatprep.subr.bf16.mxu0 0
        %1105 = vmatpush1.bf16.msra.mxu0 0
        %1106 = vmatprep.subr.bf16.mxu0 0
        %1107 = vmatpush1.bf16.msra.mxu0 0
        %1108 = vmatprep.subr.bf16.mxu0 0
        %1109 = vmatpush1.bf16.msra.mxu0 0
        %1110 = vmatprep.subr.bf16.mxu0 0
        %1111 = vmatpush1.bf16.msra.mxu0 0
        %1112 = vmatprep.subr.bf16.mxu0 0
        %1113 = vmatpush1.bf16.msra.mxu0 0
        %1114 = vmatprep.subr.bf16.mxu0 0
        %1115 = vmatpush1.bf16.msra.mxu0 0
        %1116 = vmatprep.subr.bf16.mxu0 0
        %1117 = vmatpush1.bf16.msra.mxu0 0
        %1118 = vmatprep.subr.bf16.mxu0 0
        %1119 = vmatpush1.bf16.msra.mxu0 0
        %1120 = vmatprep.subr.bf16.mxu0 0
        %1121 = vmatpush1.bf16.msra.mxu0 0
        %1122 = vmatprep.subr.bf16.mxu0 0
        %1123 = vmatpush1.bf16.msra.mxu0 0
        %1124 = vmatprep.subr.bf16.mxu0 0
        %1125 = vmatpush1.bf16.msra.mxu0 0
        %1126 = vmatprep.subr.bf16.mxu0 0
        %1127 = vmatpush1.bf16.msra.mxu0 0
        %1128 = vmatprep.subr.bf16.mxu0 0
        %1129 = vmatpush1.bf16.msra.mxu0 0
        %1130 = vmatprep.mubr.bf16.mxu0 0
        %1131 = vmatmul.mubr.bf16.gmra.mrb[0].mxu0 %v1096
        %v1132 = vpop.f32.mrb[0].mxu0
        %v1133 = vadd.f32 %v1081, %v1132
        %v1134 = vpop.f32.mrb[0].mxu0
        %v1135 = vpop.f32.mrb[0].mxu0
        %v1136 = vpop.f32.mrb[0].mxu0
        %1137 = vdwg.mxu0
        %v1138 = vtanh.pop %v1133
        %v1139 = vpack.c.bf16 %v1138, %v1138
        %v1140 = vld [vmem:[%s13] sm:$0xf]
        %v1141 = vld [vmem:[%s13 + $0x4] sm:$0xf]
        %v1142 = vld [vmem:[%s13 + $0x8] sm:$0xf]
        %v1143 = vld [vmem:[%s13 + $0xc] sm:$0xf]
        %v1144 = vld [vmem:[%s14] sm:$0x1]
        %v1146 = vlaneseq
        %v1147 = vshrl.u32 %v1146, 7
        %v1148 = vsub.s32 0, %v1147
        %v1149 = vrot.slane %v1144, %v1148
        %v1155 = vunpack.c.l.b16 %v1140
        %v1156 = vunpack.c.l.b16 %v1141
        %v1157 = vunpack.c.l.b16 %v1142
        %v1158 = vunpack.c.l.b16 %v1143
        %v1159 = vpack.c.b16 %v1156, %v1155
        %v1160 = vpack.c.b16 %v1158, %v1157
        %v1164 = vsel %vm958, %v1139, 0
        %1166 = vmatprep.subr.bf16.mxu0 0
        %1167 = vmatpush1.bf16.msra.mxu0 %v1159
        %1168 = vmatprep.subr.bf16.mxu0 0
        %1169 = vmatpush1.bf16.msra.mxu0 %v1160
        %1170 = vmatprep.subr.bf16.mxu0 0
        %1171 = vmatpush1.bf16.msra.mxu0 0
        %1172 = vmatprep.subr.bf16.mxu0 0
        %1173 = vmatpush1.bf16.msra.mxu0 0
        %1174 = vmatprep.subr.bf16.mxu0 0
        %1175 = vmatpush1.bf16.msra.mxu0 0
        %1176 = vmatprep.subr.bf16.mxu0 0
        %1177 = vmatpush1.bf16.msra.mxu0 0
        %1178 = vmatprep.subr.bf16.mxu0 0
        %1179 = vmatpush1.bf16.msra.mxu0 0
        %1180 = vmatprep.subr.bf16.mxu0 0
        %1181 = vmatpush1.bf16.msra.mxu0 0
        %1182 = vmatprep.subr.bf16.mxu0 0
        %1183 = vmatpush1.bf16.msra.mxu0 0
        %1184 = vmatprep.subr.bf16.mxu0 0
        %1185 = vmatpush1.bf16.msra.mxu0 0
        %1186 = vmatprep.subr.bf16.mxu0 0
        %1187 = vmatpush1.bf16.msra.mxu0 0
        %1188 = vmatprep.subr.bf16.mxu0 0
        %1189 = vmatpush1.bf16.msra.mxu0 0
        %1190 = vmatprep.subr.bf16.mxu0 0
        %1191 = vmatpush1.bf16.msra.mxu0 0
        %1192 = vmatprep.subr.bf16.mxu0 0
        %1193 = vmatpush1.bf16.msra.mxu0 0
        %1194 = vmatprep.subr.bf16.mxu0 0
        %1195 = vmatpush1.bf16.msra.mxu0 0
        %1196 = vmatprep.subr.bf16.mxu0 0
        %1197 = vmatpush1.bf16.msra.mxu0 0
        %1198 = vmatprep.mubr.bf16.mxu0 0
        %1199 = vmatmul.mubr.bf16.gmra.mrb[0].mxu0 %v1164
        %v1200 = vpop.f32.mrb[0].mxu0
        %v1201 = vadd.f32 %v1149, %v1200
        %v1202 = vpop.f32.mrb[0].mxu0
        %v1203 = vpop.f32.mrb[0].mxu0
        %v1204 = vpop.f32.mrb[0].mxu0
        %1205 = vdwg.mxu0
        %v1206 = vtanh.pop %v1201
        %v1207 = vadd.f32 %v1206, %v929
        %1209 = vrot.lane.b32.xlu0 %v1207, 32
        %v1210 = vpop.permute.xlu0 %1209
        %1213 = vrot.lane.b32.xlu0 %v929, 64
        %v1214 = vpop.permute.xlu0 %1213
        %v1216 = vsel %vm958, %v929, %v1210
        %vm1217 = vcmask 523264
        %v1218 = vsel %vm1217, %v1216, %v1214
        %vm1219 = vcmask 785408
        %v1220 = vsel %vm1219, %v1218, %v1214
        %1221 = vst [vmem:[%s540] sm:$0xff] %v1220
      $region88: #{_lambda_.2} parent=79 // pred_fallthru
        _
      %p1222 = scmp.lt.s32.totalorder %s30, 0
      %s1223 = scalar_select %p1222, %s30, 0
      %s1224 = smul.addr %s1223, 8
      %s1225 = scalar_lea.vmem %s15, %s1224
      // Predicated region
      $region89: #{_lambda_.2} parent=79 // pred_check
        %p1226 = pneg %p383
      $region90: #{_lambda_.2} parent=79 // pred_check_branch
        %1228 = sbr.rel (%p1226) target = $region92
      $region91: #{_lambda_.2} parent=79 // pred_region
        _
      $region92: #{_lambda_.2} parent=79 // pred_fallthru
        _
      // Predicated region
      $region93: #{_lambda_.2} parent=79 // pred_check
        %p1229 = pneg %p383
      $region94: #{_lambda_.2} parent=79 // pred_check_branch
        %1231 = sbr.rel (%p1229) target = $region96
      $region95: #{_lambda_.2} parent=79 // pred_region
        %p1232 = scmp.lt.s32.totalorder %s30, 0
        %s1233 = scalar_select %p1232, %s30, 0
        %s1234 = smul.addr %s1233, 8
        %s1235 = scalar_lea.vmem %s15, %s1234
      $region96: #{_lambda_.2} parent=79 // pred_fallthru
        _
    $region80: #{_lambda_.2} parent=5 // pred_fallthru
      _
    %p1236 = scmp.le.s32.totalorder 2, %s21
    // Predicated region
    $region97: #{_lambda_.2} parent=5 // pred_check
      %p1237 = pneg %p1236
    $region98: #{_lambda_.2} parent=5 // pred_check_branch
      %1239 = sbr.rel (%p1237) target = $region100
    $region99: #{_lambda_.2} parent=5 // pred_region
      %s1240 = ssub.s32 %s21, 2
    $region100: #{_lambda_.2} parent=5 // pred_fallthru
      _
  $region6: #{_lambda_.2} parent=0 // loop_footer
    %s25 = sadd.s32 1, %s21
  $region7: #{_lambda_.2} parent=0 // loop_footer_branch
    %20 = sbr.rel target = $region3
  $region8: #{_lambda_.2} parent=0 // loop_exit
    _

</llo_original>
